<compile_context>
chip_gen: v6e
topology: v6e:2x2x1
jax: 0.10.0
libtpu: 0.0.40
codegen_flags: <defaults>
</compile_context>

<pallas_src>
import math
import jax
import jax.numpy as jnp
from jax.experimental import pallas as pl
from jax.experimental.pallas import tpu as pltpu

# ----- small, deterministic model dims (consistent with the module's __init__) -----
HIDDEN_SIZE = 32
NUM_ATTENTION_HEADS = 4
HEAD_DIM = HIDDEN_SIZE // NUM_ATTENTION_HEADS          # 8
NUM_KEY_VALUE_HEADS = 2
GROUP = NUM_ATTENTION_HEADS // NUM_KEY_VALUE_HEADS     # 2
SEQ_LENGTH = 8                                         # length of the past KV cache
T_TOTAL = SEQ_LENGTH + 1
INTERMEDIATE_SIZE = 64
RMS_EPS = 1e-6
ROPE_BASE = 10000.0


def _vmem():
    return pl.BlockSpec(memory_space=pltpu.MemorySpace.VMEM)


def _smem():
    return pl.BlockSpec(memory_space=pltpu.MemorySpace.SMEM)


# --------------------------- fused Pallas kernel ---------------------------

def _fused_layer_kernel(pos_ref, x_ref, rope_ref, mask_ref, pk_in_ref, pv_in_ref,
                        ln1_ref, ln2_ref, wqkv_ref, bqkv_ref, wo_ref, bo_ref,
                        wgu_ref, wd_ref,
                        out_ref, pk_ref, pv_ref):
    f32 = jnp.float32
    x = x_ref[...]                                                    # (1, H)

    # ---- RMSNorm #1 ----
    var = jnp.mean(x * x, axis=-1, keepdims=True)
    hs = x * jax.lax.rsqrt(var + RMS_EPS) * ln1_ref[...]

    # ---- fused Q/K/V projection (one lane-dense 64-wide matmul + bias) ----
    qkv = jnp.dot(hs, wqkv_ref[...], preferred_element_type=f32) + bqkv_ref[...]   # (1, 64)

    # ---- gather per-position RoPE rotation matrix (SMEM scalar -> leading-dim index) ----
    pos = pos_ref[0]
    rope_m = rope_ref[pos]                                            # (D, D)

    scale = 1.0 / math.sqrt(HEAD_DIM)
    mask = mask_ref[...]                                              # (1, T) additive
    dn = (((1,), (1,)), ((), ()))                                     # contract last dims: q @ k^T

    q_off = 0
    k_off = NUM_ATTENTION_HEADS * HEAD_DIM                            # 32
    v_off = k_off + NUM_KEY_VALUE_HEADS * HEAD_DIM                    # 48

    head_outs = []
    k_new_rows = []
    v_new_rows = []
    # KV = 2 -> fully unrolled; every operand stays a small 2-D lane-layout tile.
    for h in range(NUM_KEY_VALUE_HEADS):
        # new K (with RoPE) / V rows for this KV head
        k_new = jnp.dot(qkv[:, k_off + h * HEAD_DIM: k_off + (h + 1) * HEAD_DIM],
                        rope_m, preferred_element_type=f32)           # (1, D)
        v_new = qkv[:, v_off + h * HEAD_DIM: v_off + (h + 1) * HEAD_DIM]  # (1, D)
        k_new_rows.append(k_new)
        v_new_rows.append(v_new)

        # GQA query block: the GROUP query heads served by this KV head (RoPE applied)
        q_rows = [qkv[:, q_off + (h * GROUP + g) * HEAD_DIM:
                         q_off + (h * GROUP + g + 1) * HEAD_DIM]
                  for g in range(GROUP)]
        q_h = jnp.dot(jnp.concatenate(q_rows, axis=0), rope_m,
                      preferred_element_type=f32)                     # (G, D)

        # full K/V for this head = past cache rows + freshly computed row
        k_full = jnp.concatenate([pk_in_ref[:, h, :], k_new], axis=0)  # (T, D)
        v_full = jnp.concatenate([pv_in_ref[:, h, :], v_new], axis=0)  # (T, D)

        # scores (no materialized transpose) + stable softmax + weighted V sum
        s = jax.lax.dot_general(q_h, k_full, dn,
                                preferred_element_type=f32) * scale + mask   # (G, T)
        m = jnp.max(s, axis=-1, keepdims=True)
        p = jnp.exp(s - m)
        denom = jnp.sum(p, axis=-1, keepdims=True)
        inv = pl.reciprocal(denom, approx=True)                       # EUP, not VALU divide
        o_h = jnp.dot(p, v_full, preferred_element_type=f32) * inv    # (G, D)
        for g in range(GROUP):
            head_outs.append(o_h[g:g + 1, :])                         # (1, D) rows, head order

    # ---- KV cache writeback: copy past rows + append only the new token row ----
    pk_ref[0:SEQ_LENGTH, :, :] = pk_in_ref[...]
    pv_ref[0:SEQ_LENGTH, :, :] = pv_in_ref[...]
    pk_ref[SEQ_LENGTH, :, :] = jnp.concatenate(k_new_rows, axis=0)    # (KV, D)
    pv_ref[SEQ_LENGTH, :, :] = jnp.concatenate(v_new_rows, axis=0)

    # ---- o_proj + residual ----
    attn_flat = jnp.concatenate(head_outs, axis=-1)                   # (1, NH*D)
    attn_o = jnp.dot(attn_flat, wo_ref[...], preferred_element_type=f32) + bo_ref[...]
    x1 = x + attn_o

    # ---- RMSNorm #2 + fused gate/up MLP (128-lane output) + down proj + residual ----
    var2 = jnp.mean(x1 * x1, axis=-1, keepdims=True)
    hs2 = x1 * jax.lax.rsqrt(var2 + RMS_EPS) * ln2_ref[...]
    gu = jnp.dot(hs2, wgu_ref[...], preferred_element_type=f32)       # (1, 2*I)
    g = gu[:, :INTERMEDIATE_SIZE]
    u = gu[:, INTERMEDIATE_SIZE:]
    ff = jnp.dot((g * jax.nn.sigmoid(g)) * u, wd_ref[...], preferred_element_type=f32)
    out_ref[...] = x1 + ff


_fused_layer = pl.pallas_call(
    _fused_layer_kernel,
    out_shape=(
        jax.ShapeDtypeStruct((1, HIDDEN_SIZE), jnp.float32),
        jax.ShapeDtypeStruct((T_TOTAL, NUM_KEY_VALUE_HEADS, HEAD_DIM), jnp.float32),
        jax.ShapeDtypeStruct((T_TOTAL, NUM_KEY_VALUE_HEADS, HEAD_DIM), jnp.float32),
    ),
    in_specs=[_smem()] + [_vmem()] * 13,
    out_specs=(_vmem(), _vmem(), _vmem()),
)


# --------------------------- params & wrapper ---------------------------

def init_params(key):
    ks = jax.random.split(key, 10)
    s = 0.02

    def w(k, shape):
        return jax.random.normal(k, shape, dtype=jnp.float32) * s

    wq = w(ks[0], (HIDDEN_SIZE, NUM_ATTENTION_HEADS * HEAD_DIM))
    bq = w(ks[1], (1, NUM_ATTENTION_HEADS * HEAD_DIM))
    wk = w(ks[2], (HIDDEN_SIZE, NUM_KEY_VALUE_HEADS * HEAD_DIM))
    bk = w(ks[3], (1, NUM_KEY_VALUE_HEADS * HEAD_DIM))
    wv = w(ks[4], (HIDDEN_SIZE, NUM_KEY_VALUE_HEADS * HEAD_DIM))
    bv = w(ks[5], (1, NUM_KEY_VALUE_HEADS * HEAD_DIM))

    params = {
        "input_ln_w": jnp.ones((1, HIDDEN_SIZE), jnp.float32),
        "post_ln_w": jnp.ones((1, HIDDEN_SIZE), jnp.float32),
        # fused projection weights (lane-dense matmul outputs)
        "w_qkv": jnp.concatenate([wq, wk, wv], axis=1),                # (32, 64)
        "b_qkv": jnp.concatenate([bq, bk, bv], axis=1),                # (1, 64)
        "wo": w(ks[6], (NUM_ATTENTION_HEADS * HEAD_DIM, HIDDEN_SIZE)),
        "bo": jnp.zeros((1, HIDDEN_SIZE), jnp.float32),
        "w_gate_up": jnp.concatenate(
            [w(ks[7], (HIDDEN_SIZE, INTERMEDIATE_SIZE)),
             w(ks[8], (HIDDEN_SIZE, INTERMEDIATE_SIZE))], axis=1),     # (32, 128)
        "w_down": w(ks[9], (INTERMEDIATE_SIZE, HIDDEN_SIZE)),
    }

    # rotary tables (same as the module's __init__: view(SEQ_LENGTH, HEAD_DIM))
    inv_freq = 1.0 / (
        ROPE_BASE ** (jnp.arange(0, HEAD_DIM, 2, dtype=jnp.float32) / HEAD_DIM))
    t = jnp.arange(SEQ_LENGTH, dtype=jnp.float32)
    freqs = jnp.outer(t, inv_freq)                                     # (SEQ, D/2)
    emb = jnp.concatenate([freqs, freqs], axis=-1)                     # (SEQ, D)
    cos = jnp.cos(emb)
    sin = jnp.sin(emb)

    # Fold HF rotate_half RoPE into per-position (D, D) matrices:
    #   rope(x) = x*cos + rotate_half(x)*sin  ==  x @ M[pos]
    # with M[p, i, j] = eye[i, j]*cos[p, j] + R[i, j]*sin[p, j].
    d2 = HEAD_DIM // 2
    eye = jnp.eye(HEAD_DIM, dtype=jnp.float32)
    r = jnp.zeros((HEAD_DIM, HEAD_DIM), jnp.float32)
    r = r.at[jnp.arange(d2) + d2, jnp.arange(d2)].set(-1.0)   # rot_j = -x_{j+d2}, j <  d2
    r = r.at[jnp.arange(d2), jnp.arange(d2) + d2].set(1.0)    # rot_j = +x_{j-d2}, j >= d2
    params["rope_mat"] = eye[None] * cos[:, None, :] + r[None] * sin[:, None, :]  # (SEQ, D, D)
    return params


def block_cache_forward(params, hidden_states, position_ids, attention_mask,
                        past_k, past_v):
    """One decoder layer with KV cache (single fused Pallas kernel).

    hidden_states : (1, 1, HIDDEN)       float32
    position_ids  : (1, 1)               int32, index into rotary tables
    attention_mask: (1, 1, 1, SEQ+1)     additive float32 mask
    past_k/past_v : (1, SEQ, KV, D)      float32
    returns (hidden_states, present_k, present_v), present_* = concat(past, new)
    """
    x = hidden_states.reshape(1, HIDDEN_SIZE)
    # clamp like a jnp gather would; table only covers [0, SEQ_LENGTH) (module semantics)
    pos = jnp.clip(position_ids.reshape(1).astype(jnp.int32), 0, SEQ_LENGTH - 1)
    mask = attention_mask.reshape(1, T_TOTAL)
    pk = past_k.reshape(SEQ_LENGTH, NUM_KEY_VALUE_HEADS, HEAD_DIM)
    pv = past_v.reshape(SEQ_LENGTH, NUM_KEY_VALUE_HEADS, HEAD_DIM)

    out, present_k, present_v = _fused_layer(
        pos, x, params["rope_mat"], mask, pk, pv,
        params["input_ln_w"], params["post_ln_w"],
        params["w_qkv"], params["b_qkv"],
        params["wo"], params["bo"],
        params["w_gate_up"], params["w_down"],
    )
    return (out.reshape(1, 1, HIDDEN_SIZE),
            present_k.reshape(1, T_TOTAL, NUM_KEY_VALUE_HEADS, HEAD_DIM),
            present_v.reshape(1, T_TOTAL, NUM_KEY_VALUE_HEADS, HEAD_DIM))


if __name__ == "__main__":
    key = jax.random.PRNGKey(0)
    kp, k1, k2, k3 = jax.random.split(key, 4)

    params = init_params(kp)

    hidden_states = jax.random.normal(k1, (1, 1, HIDDEN_SIZE), dtype=jnp.float32)
    position_ids = jnp.array([[SEQ_LENGTH - 1]], dtype=jnp.int32)
    attention_mask = jnp.zeros((1, 1, 1, T_TOTAL), dtype=jnp.float32)
    past_k = jax.random.normal(
        k2, (1, SEQ_LENGTH, NUM_KEY_VALUE_HEADS, HEAD_DIM), dtype=jnp.float32)
    past_v = jax.random.normal(
        k3, (1, SEQ_LENGTH, NUM_KEY_VALUE_HEADS, HEAD_DIM), dtype=jnp.float32)

    out, present_k, present_v = jax.jit(block_cache_forward)(
        params, hidden_states, position_ids, attention_mask, past_k, past_v)
    jax.block_until_ready((out, present_k, present_v))

    assert out.shape == (1, 1, HIDDEN_SIZE)
    assert present_k.shape == (1, T_TOTAL, NUM_KEY_VALUE_HEADS, HEAD_DIM)
    assert present_v.shape == (1, T_TOTAL, NUM_KEY_VALUE_HEADS, HEAD_DIM)
    assert bool(jnp.all(jnp.isfinite(out)))
    assert bool(jnp.all(jnp.isfinite(present_k))) and bool(jnp.all(jnp.isfinite(present_v)))
    print("KERNEL_OK")
</pallas_src>

<mosaic_0001>
module attributes {stable_mosaic.version = 11 : i64} {
  func.func @_fused_layer_kernel(%arg0: memref<1xi32, #tpu.memory_space<smem>>, %arg1: memref<1x32xf32, #tpu.memory_space<vmem>>, %arg2: memref<8x8x8xf32, #tpu.memory_space<vmem>>, %arg3: memref<1x9xf32, #tpu.memory_space<vmem>>, %arg4: memref<8x2x8xf32, #tpu.memory_space<vmem>>, %arg5: memref<8x2x8xf32, #tpu.memory_space<vmem>>, %arg6: memref<1x32xf32, #tpu.memory_space<vmem>>, %arg7: memref<1x32xf32, #tpu.memory_space<vmem>>, %arg8: memref<32x64xf32, #tpu.memory_space<vmem>>, %arg9: memref<1x64xf32, #tpu.memory_space<vmem>>, %arg10: memref<32x32xf32, #tpu.memory_space<vmem>>, %arg11: memref<1x32xf32, #tpu.memory_space<vmem>>, %arg12: memref<32x128xf32, #tpu.memory_space<vmem>>, %arg13: memref<64x32xf32, #tpu.memory_space<vmem>>, %arg14: memref<1x32xf32, #tpu.memory_space<vmem>>, %arg15: memref<9x2x8xf32, #tpu.memory_space<vmem>>, %arg16: memref<9x2x8xf32, #tpu.memory_space<vmem>>) attributes {dimension_semantics = [], scalar_prefetch = 0 : i64, scratch_operands = 0 : i64, tpu.core_type = #tpu.core_type<tc>} {
    %c0 = arith.constant 0 : index
    %c0_0 = arith.constant 0 : index
    %0 = vector.load %arg1[%c0, %c0_0] : memref<1x32xf32, #tpu.memory_space<vmem>>, vector<1x32xf32>
    %1 = arith.mulf %0, %0 : vector<1x32xf32>
    %cst = arith.constant dense<0.000000e+00> : vector<1xf32>
    %2 = vector.multi_reduction <add>, %1, %cst [1] : vector<1x32xf32> to vector<1xf32>
    %3 = vector.shape_cast %2 : vector<1xf32> to vector<1x1xf32>
    %cst_1 = arith.constant 3.200000e+01 : f32
    %4 = vector.broadcast %cst_1 : f32 to vector<1x1xf32>
    %5 = arith.divf %3, %4 : vector<1x1xf32>
    %cst_2 = arith.constant 9.99999997E-7 : f32
    %6 = vector.broadcast %cst_2 : f32 to vector<1x1xf32>
    %7 = arith.addf %5, %6 : vector<1x1xf32>
    %8 = math.rsqrt %7 : vector<1x1xf32>
    %9 = vector.broadcast %8 : vector<1x1xf32> to vector<1x32xf32>
    %10 = arith.mulf %0, %9 : vector<1x32xf32>
    %c0_3 = arith.constant 0 : index
    %c0_4 = arith.constant 0 : index
    %11 = vector.load %arg6[%c0_3, %c0_4] : memref<1x32xf32, #tpu.memory_space<vmem>>, vector<1x32xf32>
    %12 = arith.mulf %10, %11 : vector<1x32xf32>
    %c0_5 = arith.constant 0 : index
    %c0_6 = arith.constant 0 : index
    %13 = vector.load %arg8[%c0_5, %c0_6] : memref<32x64xf32, #tpu.memory_space<vmem>>, vector<32x64xf32>
    %cst_7 = arith.constant dense<0.000000e+00> : vector<1x64xf32>
    %14 = tpu.matmul %12, %13, %cst_7 {dimension_numbers = #tpu.dot_dimension_numbers<[1], [0], [0], [1], [0, 0, 1, 1], [], []>} : vector<1x32xf32>, vector<32x64xf32>, vector<1x64xf32> -> vector<1x64xf32>
    %c0_8 = arith.constant 0 : index
    %c0_9 = arith.constant 0 : index
    %15 = vector.load %arg9[%c0_8, %c0_9] : memref<1x64xf32, #tpu.memory_space<vmem>>, vector<1x64xf32>
    %16 = arith.addf %14, %15 : vector<1x64xf32>
    %c0_10 = arith.constant 0 : index
    %17 = memref.load %arg0[%c0_10] : memref<1xi32, #tpu.memory_space<smem>>
    %18 = arith.index_cast %17 : i32 to index
    %c0_11 = arith.constant 0 : index
    %c0_12 = arith.constant 0 : index
    %19 = vector.load %arg2[%18, %c0_11, %c0_12] : memref<8x8x8xf32, #tpu.memory_space<vmem>>, vector<1x8x8xf32>
    %20 = vector.shape_cast %19 : vector<1x8x8xf32> to vector<8x8xf32>
    %c0_13 = arith.constant 0 : index
    %c0_14 = arith.constant 0 : index
    %21 = vector.load %arg3[%c0_13, %c0_14] : memref<1x9xf32, #tpu.memory_space<vmem>>, vector<1x9xf32>
    %22 = vector.extract_strided_slice %16 {offsets = [0, 32], sizes = [1, 8], strides = [1, 1]} : vector<1x64xf32> to vector<1x8xf32>
    %cst_15 = arith.constant dense<0.000000e+00> : vector<1x8xf32>
    %23 = tpu.matmul %22, %20, %cst_15 {dimension_numbers = #tpu.dot_dimension_numbers<[1], [0], [0], [1], [0, 0, 1, 1], [], []>} : vector<1x8xf32>, vector<8x8xf32>, vector<1x8xf32> -> vector<1x8xf32>
    %24 = vector.extract_strided_slice %16 {offsets = [0, 48], sizes = [1, 8], strides = [1, 1]} : vector<1x64xf32> to vector<1x8xf32>
    %25 = vector.extract_strided_slice %16 {offsets = [0, 0], sizes = [1, 8], strides = [1, 1]} : vector<1x64xf32> to vector<1x8xf32>
    %26 = vector.extract_strided_slice %16 {offsets = [0, 8], sizes = [1, 8], strides = [1, 1]} : vector<1x64xf32> to vector<1x8xf32>
    %27 = tpu.concatenate %25, %26 in 0 : vector<1x8xf32>, vector<1x8xf32> -> vector<2x8xf32>
    %cst_16 = arith.constant dense<0.000000e+00> : vector<2x8xf32>
    %28 = tpu.matmul %27, %20, %cst_16 {dimension_numbers = #tpu.dot_dimension_numbers<[1], [0], [0], [1], [0, 0, 1, 1], [], []>} : vector<2x8xf32>, vector<8x8xf32>, vector<2x8xf32> -> vector<2x8xf32>
    %c0_17 = arith.constant 0 : index
    %c0_18 = arith.constant 0 : index
    %c0_19 = arith.constant 0 : index
    %29 = vector.load %arg4[%c0_17, %c0_18, %c0_19] : memref<8x2x8xf32, #tpu.memory_space<vmem>>, vector<8x1x8xf32>
    %30 = vector.shape_cast %29 : vector<8x1x8xf32> to vector<8x8xf32>
    %31 = tpu.concatenate %30, %23 in 0 : vector<8x8xf32>, vector<1x8xf32> -> vector<9x8xf32>
    %c0_20 = arith.constant 0 : index
    %c0_21 = arith.constant 0 : index
    %c0_22 = arith.constant 0 : index
    %32 = vector.load %arg5[%c0_20, %c0_21, %c0_22] : memref<8x2x8xf32, #tpu.memory_space<vmem>>, vector<8x1x8xf32>
    %33 = vector.shape_cast %32 : vector<8x1x8xf32> to vector<8x8xf32>
    %34 = tpu.concatenate %33, %24 in 0 : vector<8x8xf32>, vector<1x8xf32> -> vector<9x8xf32>
    %cst_23 = arith.constant dense<0.000000e+00> : vector<2x9xf32>
    %35 = tpu.matmul %28, %31, %cst_23 {dimension_numbers = #tpu.dot_dimension_numbers<[1], [1], [0], [0], [0, 0, 1, 0], [], []>} : vector<2x8xf32>, vector<9x8xf32>, vector<2x9xf32> -> vector<2x9xf32>
    %cst_24 = arith.constant 0.353553385 : f32
    %36 = vector.broadcast %cst_24 : f32 to vector<2x9xf32>
    %37 = arith.mulf %35, %36 : vector<2x9xf32>
    %38 = vector.broadcast %21 : vector<1x9xf32> to vector<2x9xf32>
    %39 = arith.addf %37, %38 : vector<2x9xf32>
    %cst_25 = arith.constant dense<0xFF800000> : vector<2xf32>
    %40 = vector.multi_reduction <maximumf>, %39, %cst_25 [1] : vector<2x9xf32> to vector<2xf32>
    %41 = vector.shape_cast %40 : vector<2xf32> to vector<2x1xf32>
    %42 = vector.broadcast %41 : vector<2x1xf32> to vector<2x9xf32>
    %43 = arith.subf %39, %42 : vector<2x9xf32>
    %44 = math.exp %43 : vector<2x9xf32>
    %cst_26 = arith.constant dense<0.000000e+00> : vector<2xf32>
    %45 = vector.multi_reduction <add>, %44, %cst_26 [1] : vector<2x9xf32> to vector<2xf32>
    %46 = vector.shape_cast %45 : vector<2xf32> to vector<2x1xf32>
    %47 = tpu.reciprocal %46 {approx = true} : vector<2x1xf32> -> vector<2x1xf32>
    %cst_27 = arith.constant dense<0.000000e+00> : vector<2x8xf32>
    %48 = tpu.matmul %44, %34, %cst_27 {dimension_numbers = #tpu.dot_dimension_numbers<[1], [0], [0], [1], [0, 0, 1, 1], [], []>} : vector<2x9xf32>, vector<9x8xf32>, vector<2x8xf32> -> vector<2x8xf32>
    %49 = vector.broadcast %47 : vector<2x1xf32> to vector<2x8xf32>
    %50 = arith.mulf %48, %49 : vector<2x8xf32>
    %51 = vector.extract_strided_slice %50 {offsets = [0, 0], sizes = [1, 8], strides = [1, 1]} : vector<2x8xf32> to vector<1x8xf32>
    %52 = vector.extract_strided_slice %50 {offsets = [1, 0], sizes = [1, 8], strides = [1, 1]} : vector<2x8xf32> to vector<1x8xf32>
    %53 = vector.extract_strided_slice %16 {offsets = [0, 40], sizes = [1, 8], strides = [1, 1]} : vector<1x64xf32> to vector<1x8xf32>
    %cst_28 = arith.constant dense<0.000000e+00> : vector<1x8xf32>
    %54 = tpu.matmul %53, %20, %cst_28 {dimension_numbers = #tpu.dot_dimension_numbers<[1], [0], [0], [1], [0, 0, 1, 1], [], []>} : vector<1x8xf32>, vector<8x8xf32>, vector<1x8xf32> -> vector<1x8xf32>
    %55 = vector.extract_strided_slice %16 {offsets = [0, 56], sizes = [1, 8], strides = [1, 1]} : vector<1x64xf32> to vector<1x8xf32>
    %56 = vector.extract_strided_slice %16 {offsets = [0, 16], sizes = [1, 8], strides = [1, 1]} : vector<1x64xf32> to vector<1x8xf32>
    %57 = vector.extract_strided_slice %16 {offsets = [0, 24], sizes = [1, 8], strides = [1, 1]} : vector<1x64xf32> to vector<1x8xf32>
    %58 = tpu.concatenate %56, %57 in 0 : vector<1x8xf32>, vector<1x8xf32> -> vector<2x8xf32>
    %cst_29 = arith.constant dense<0.000000e+00> : vector<2x8xf32>
    %59 = tpu.matmul %58, %20, %cst_29 {dimension_numbers = #tpu.dot_dimension_numbers<[1], [0], [0], [1], [0, 0, 1, 1], [], []>} : vector<2x8xf32>, vector<8x8xf32>, vector<2x8xf32> -> vector<2x8xf32>
    %c0_30 = arith.constant 0 : index
    %c1 = arith.constant 1 : index
    %c0_31 = arith.constant 0 : index
    %60 = vector.load %arg4[%c0_30, %c1, %c0_31] : memref<8x2x8xf32, #tpu.memory_space<vmem>>, vector<8x1x8xf32>
    %61 = vector.shape_cast %60 : vector<8x1x8xf32> to vector<8x8xf32>
    %62 = tpu.concatenate %61, %54 in 0 : vector<8x8xf32>, vector<1x8xf32> -> vector<9x8xf32>
    %c0_32 = arith.constant 0 : index
    %c1_33 = arith.constant 1 : index
    %c0_34 = arith.constant 0 : index
    %63 = vector.load %arg5[%c0_32, %c1_33, %c0_34] : memref<8x2x8xf32, #tpu.memory_space<vmem>>, vector<8x1x8xf32>
    %64 = vector.shape_cast %63 : vector<8x1x8xf32> to vector<8x8xf32>
    %65 = tpu.concatenate %64, %55 in 0 : vector<8x8xf32>, vector<1x8xf32> -> vector<9x8xf32>
    %cst_35 = arith.constant dense<0.000000e+00> : vector<2x9xf32>
    %66 = tpu.matmul %59, %62, %cst_35 {dimension_numbers = #tpu.dot_dimension_numbers<[1], [1], [0], [0], [0, 0, 1, 0], [], []>} : vector<2x8xf32>, vector<9x8xf32>, vector<2x9xf32> -> vector<2x9xf32>
    %cst_36 = arith.constant 0.353553385 : f32
    %67 = vector.broadcast %cst_36 : f32 to vector<2x9xf32>
    %68 = arith.mulf %66, %67 : vector<2x9xf32>
    %69 = vector.broadcast %21 : vector<1x9xf32> to vector<2x9xf32>
    %70 = arith.addf %68, %69 : vector<2x9xf32>
    %cst_37 = arith.constant dense<0xFF800000> : vector<2xf32>
    %71 = vector.multi_reduction <maximumf>, %70, %cst_37 [1] : vector<2x9xf32> to vector<2xf32>
    %72 = vector.shape_cast %71 : vector<2xf32> to vector<2x1xf32>
    %73 = vector.broadcast %72 : vector<2x1xf32> to vector<2x9xf32>
    %74 = arith.subf %70, %73 : vector<2x9xf32>
    %75 = math.exp %74 : vector<2x9xf32>
    %cst_38 = arith.constant dense<0.000000e+00> : vector<2xf32>
    %76 = vector.multi_reduction <add>, %75, %cst_38 [1] : vector<2x9xf32> to vector<2xf32>
    %77 = vector.shape_cast %76 : vector<2xf32> to vector<2x1xf32>
    %78 = tpu.reciprocal %77 {approx = true} : vector<2x1xf32> -> vector<2x1xf32>
    %cst_39 = arith.constant dense<0.000000e+00> : vector<2x8xf32>
    %79 = tpu.matmul %75, %65, %cst_39 {dimension_numbers = #tpu.dot_dimension_numbers<[1], [0], [0], [1], [0, 0, 1, 1], [], []>} : vector<2x9xf32>, vector<9x8xf32>, vector<2x8xf32> -> vector<2x8xf32>
    %80 = vector.broadcast %78 : vector<2x1xf32> to vector<2x8xf32>
    %81 = arith.mulf %79, %80 : vector<2x8xf32>
    %82 = vector.extract_strided_slice %81 {offsets = [0, 0], sizes = [1, 8], strides = [1, 1]} : vector<2x8xf32> to vector<1x8xf32>
    %83 = vector.extract_strided_slice %81 {offsets = [1, 0], sizes = [1, 8], strides = [1, 1]} : vector<2x8xf32> to vector<1x8xf32>
    %c0_40 = arith.constant 0 : index
    %c0_41 = arith.constant 0 : index
    %c0_42 = arith.constant 0 : index
    %84 = vector.load %arg4[%c0_40, %c0_41, %c0_42] : memref<8x2x8xf32, #tpu.memory_space<vmem>>, vector<8x2x8xf32>
    %c0_43 = arith.constant 0 : index
    %c0_44 = arith.constant 0 : index
    %c0_45 = arith.constant 0 : index
    %85 = vector.load %arg15[%c0_43, %c0_44, %c0_45] : memref<9x2x8xf32, #tpu.memory_space<vmem>>, vector<8x2x8xf32>
    tpu.vector_store %arg15[%c0_43, %c0_44, %c0_45], %84 {strides = array<i32>} : memref<9x2x8xf32, #tpu.memory_space<vmem>>, vector<8x2x8xf32>,
    %c0_46 = arith.constant 0 : index
    %c0_47 = arith.constant 0 : index
    %c0_48 = arith.constant 0 : index
    %86 = vector.load %arg5[%c0_46, %c0_47, %c0_48] : memref<8x2x8xf32, #tpu.memory_space<vmem>>, vector<8x2x8xf32>
    %c0_49 = arith.constant 0 : index
    %c0_50 = arith.constant 0 : index
    %c0_51 = arith.constant 0 : index
    %87 = vector.load %arg16[%c0_49, %c0_50, %c0_51] : memref<9x2x8xf32, #tpu.memory_space<vmem>>, vector<8x2x8xf32>
    tpu.vector_store %arg16[%c0_49, %c0_50, %c0_51], %86 {strides = array<i32>} : memref<9x2x8xf32, #tpu.memory_space<vmem>>, vector<8x2x8xf32>,
    %88 = tpu.concatenate %23, %54 in 0 : vector<1x8xf32>, vector<1x8xf32> -> vector<2x8xf32>
    %c8 = arith.constant 8 : index
    %c0_52 = arith.constant 0 : index
    %c0_53 = arith.constant 0 : index
    %89 = vector.load %arg15[%c8, %c0_52, %c0_53] : memref<9x2x8xf32, #tpu.memory_space<vmem>>, vector<1x2x8xf32>
    %90 = vector.shape_cast %89 : vector<1x2x8xf32> to vector<2x8xf32>
    %91 = vector.shape_cast %88 : vector<2x8xf32> to vector<1x2x8xf32>
    tpu.vector_store %arg15[%c8, %c0_52, %c0_53], %91 {strides = array<i32>} : memref<9x2x8xf32, #tpu.memory_space<vmem>>, vector<1x2x8xf32>,
    %92 = tpu.concatenate %24, %55 in 0 : vector<1x8xf32>, vector<1x8xf32> -> vector<2x8xf32>
    %c8_54 = arith.constant 8 : index
    %c0_55 = arith.constant 0 : index
    %c0_56 = arith.constant 0 : index
    %93 = vector.load %arg16[%c8_54, %c0_55, %c0_56] : memref<9x2x8xf32, #tpu.memory_space<vmem>>, vector<1x2x8xf32>
    %94 = vector.shape_cast %93 : vector<1x2x8xf32> to vector<2x8xf32>
    %95 = vector.shape_cast %92 : vector<2x8xf32> to vector<1x2x8xf32>
    tpu.vector_store %arg16[%c8_54, %c0_55, %c0_56], %95 {strides = array<i32>} : memref<9x2x8xf32, #tpu.memory_space<vmem>>, vector<1x2x8xf32>,
    %96 = tpu.concatenate %51, %52, %82, %83 in 1 : vector<1x8xf32>, vector<1x8xf32>, vector<1x8xf32>, vector<1x8xf32> -> vector<1x32xf32>
    %c0_57 = arith.constant 0 : index
    %c0_58 = arith.constant 0 : index
    %97 = vector.load %arg10[%c0_57, %c0_58] : memref<32x32xf32, #tpu.memory_space<vmem>>, vector<32x32xf32>
    %cst_59 = arith.constant dense<0.000000e+00> : vector<1x32xf32>
    %98 = tpu.matmul %96, %97, %cst_59 {dimension_numbers = #tpu.dot_dimension_numbers<[1], [0], [0], [1], [0, 0, 1, 1], [], []>} : vector<1x32xf32>, vector<32x32xf32>, vector<1x32xf32> -> vector<1x32xf32>
    %c0_60 = arith.constant 0 : index
    %c0_61 = arith.constant 0 : index
    %99 = vector.load %arg11[%c0_60, %c0_61] : memref<1x32xf32, #tpu.memory_space<vmem>>, vector<1x32xf32>
    %100 = arith.addf %98, %99 : vector<1x32xf32>
    %101 = arith.addf %0, %100 : vector<1x32xf32>
    %102 = arith.mulf %101, %101 : vector<1x32xf32>
    %cst_62 = arith.constant dense<0.000000e+00> : vector<1xf32>
    %103 = vector.multi_reduction <add>, %102, %cst_62 [1] : vector<1x32xf32> to vector<1xf32>
    %104 = vector.shape_cast %103 : vector<1xf32> to vector<1x1xf32>
    %cst_63 = arith.constant 3.200000e+01 : f32
    %105 = vector.broadcast %cst_63 : f32 to vector<1x1xf32>
    %106 = arith.divf %104, %105 : vector<1x1xf32>
    %cst_64 = arith.constant 9.99999997E-7 : f32
    %107 = vector.broadcast %cst_64 : f32 to vector<1x1xf32>
    %108 = arith.addf %106, %107 : vector<1x1xf32>
    %109 = math.rsqrt %108 : vector<1x1xf32>
    %110 = vector.broadcast %109 : vector<1x1xf32> to vector<1x32xf32>
    %111 = arith.mulf %101, %110 : vector<1x32xf32>
    %c0_65 = arith.constant 0 : index
    %c0_66 = arith.constant 0 : index
    %112 = vector.load %arg7[%c0_65, %c0_66] : memref<1x32xf32, #tpu.memory_space<vmem>>, vector<1x32xf32>
    %113 = arith.mulf %111, %112 : vector<1x32xf32>
    %c0_67 = arith.constant 0 : index
    %c0_68 = arith.constant 0 : index
    %114 = vector.load %arg12[%c0_67, %c0_68] : memref<32x128xf32, #tpu.memory_space<vmem>>, vector<32x128xf32>
    %cst_69 = arith.constant dense<0.000000e+00> : vector<1x128xf32>
    %115 = tpu.matmul %113, %114, %cst_69 {dimension_numbers = #tpu.dot_dimension_numbers<[1], [0], [0], [1], [0, 0, 1, 1], [], []>} : vector<1x32xf32>, vector<32x128xf32>, vector<1x128xf32> -> vector<1x128xf32>
    %116 = vector.extract_strided_slice %115 {offsets = [0, 0], sizes = [1, 64], strides = [1, 1]} : vector<1x128xf32> to vector<1x64xf32>
    %117 = vector.extract_strided_slice %115 {offsets = [0, 64], sizes = [1, 64], strides = [1, 1]} : vector<1x128xf32> to vector<1x64xf32>
    %118 = arith.negf %116 : vector<1x64xf32>
    %119 = math.exp %118 : vector<1x64xf32>
    %cst_70 = arith.constant 1.000000e+00 : f32
    %120 = vector.broadcast %cst_70 : f32 to vector<1x64xf32>
    %121 = arith.addf %120, %119 : vector<1x64xf32>
    %122 = arith.divf %120, %121 : vector<1x64xf32>
    %123 = arith.mulf %116, %122 : vector<1x64xf32>
    %124 = arith.mulf %123, %117 : vector<1x64xf32>
    %c0_71 = arith.constant 0 : index
    %c0_72 = arith.constant 0 : index
    %125 = vector.load %arg13[%c0_71, %c0_72] : memref<64x32xf32, #tpu.memory_space<vmem>>, vector<64x32xf32>
    %cst_73 = arith.constant dense<0.000000e+00> : vector<1x32xf32>
    %126 = tpu.matmul %124, %125, %cst_73 {dimension_numbers = #tpu.dot_dimension_numbers<[1], [0], [0], [1], [0, 0, 1, 1], [], []>} : vector<1x64xf32>, vector<64x32xf32>, vector<1x32xf32> -> vector<1x32xf32>
    %127 = arith.addf %101, %126 : vector<1x32xf32>
    %c0_74 = arith.constant 0 : index
    %c0_75 = arith.constant 0 : index
    %128 = vector.load %arg14[%c0_74, %c0_75] : memref<1x32xf32, #tpu.memory_space<vmem>>, vector<1x32xf32>
    tpu.vector_store %arg14[%c0_74, %c0_75], %127 {strides = array<i32>} : memref<1x32xf32, #tpu.memory_space<vmem>>, vector<1x32xf32>,
    return
  }
}

</mosaic_0001>

<llo_original>
// kernel: block_cache_forward.1
$region0: #{block_cache_forward.1}
  #allocation0 [shape = 'u32[]', space=smem, size = 0x4, offset = 0x4, fixed_abs, tag = 'smem constant byte address 0x4 - core index']
  #allocation1 [shape = 'u32[144,128]{1,0:T(1,128)}', space=vmem, size = 0x12000, scoped, tag = 'internal scratch']
  #allocation2 [shape = 's32[1]{0:T(128)S(6)}', space=smem, size = 0x200, scoped, tag = 'scoped memory for block_cache_forward.1']
  %s0 = inlined_call_operand.<no memory space> [shape: s32[1], index: 0, kind: input, shape index: {}]
  %s1 = inlined_call_operand.vmem [shape: f32[1,32], index: 1, kind: input, shape index: {}]
  %s2 = inlined_call_operand.vmem [shape: f32[8,8,8], index: 2, kind: input, shape index: {}]
  %s3 = inlined_call_operand.vmem [shape: f32[1,9], index: 3, kind: input, shape index: {}]
  %s4 = inlined_call_operand.vmem [shape: f32[8,2,8], index: 4, kind: input, shape index: {}]
  %s5 = inlined_call_operand.vmem [shape: f32[8,2,8], index: 5, kind: input, shape index: {}]
  %s6 = inlined_call_operand.hbm [shape: f32[1,32], index: 6, kind: input, shape index: {}]
  %s7 = inlined_call_operand.hbm [shape: f32[1,32], index: 7, kind: input, shape index: {}]
  %s8 = inlined_call_operand.vmem [shape: f32[32,64], index: 8, kind: input, shape index: {}]
  %s9 = inlined_call_operand.hbm [shape: f32[1,64], index: 9, kind: input, shape index: {}]
  %s10 = inlined_call_operand.hbm [shape: f32[32,32], index: 10, kind: input, shape index: {}]
  %s11 = inlined_call_operand.hbm [shape: f32[1,32], index: 11, kind: input, shape index: {}]
  %s12 = inlined_call_operand.hbm [shape: f32[32,128], index: 12, kind: input, shape index: {}]
  %s13 = inlined_call_operand.vmem [shape: f32[64,32], index: 13, kind: input, shape index: {}]
  %s14 = inlined_call_operand.hbm [shape: f32[1,32], index: 14, kind: output, shape index: {0}]
  %s15 = inlined_call_operand.vmem [shape: f32[9,2,8], index: 15, kind: output, shape index: {1}]
  %s16 = inlined_call_operand.vmem [shape: f32[9,2,8], index: 16, kind: output, shape index: {2}]
  %17 = xla_tuple %s14, %s15, %s16
  %s18 = sld [smem:[#allocation0]]
  $region106: #{block_cache_forward.1} parent=0
    _
  %s20 = ssub.s32 1, %s18
  %s21 = scalar_select 0, %s20, %s18
  %22 = sst [smem:[#allocation2]] %s0
  $region1: #{block_cache_forward.1} parent=0
    #allocation3 [shape = 'u8[512]{0}', space=vmem, size = 0x400, scoped, tag = 'input window, operand 6, single buffered']
    #allocation4 [shape = 's32[1]{0}', space=sflag, size = 0x4, scoped, tag = 'scoped memory for block_cache_forward.1']
    #allocation5 [shape = 's32[1]{0}', space=sflag, size = 0x4, scoped, tag = 'scoped memory for block_cache_forward.1']
    #allocation6 [shape = 'u8[512]{0}', space=vmem, size = 0x400, scoped, tag = 'input window, operand 7, single buffered']
    #allocation7 [shape = 's32[1]{0}', space=sflag, size = 0x4, scoped, tag = 'scoped memory for block_cache_forward.1']
    #allocation8 [shape = 'u8[512]{0}', space=vmem, size = 0x400, scoped, tag = 'input window, operand 9, single buffered']
    #allocation9 [shape = 'u8[16384]{0}', space=vmem, size = 0x4000, scoped, tag = 'input window, operand 10, single buffered']
    #allocation10 [shape = 's32[1]{0}', space=sflag, size = 0x4, scoped, tag = 'scoped memory for block_cache_forward.1']
    #allocation11 [shape = 'u8[512]{0}', space=vmem, size = 0x400, scoped, tag = 'input window, operand 11, single buffered']
    #allocation12 [shape = 'u8[16384]{0}', space=vmem, size = 0x4000, scoped, tag = 'input window, operand 12, single buffered']
    #allocation13 [shape = 's32[1]{0}', space=sflag, size = 0x4, scoped, tag = 'scoped memory for block_cache_forward.1']
    #allocation14 [shape = 'u8[512]{0}', space=vmem, size = 0x400, scoped, tag = 'output window, operand 0, single buffered']
    %23 = vsyncpa [#allocation4], 0
    %24 = vsyncpa [#allocation7], 0
    %25 = vsyncpa [#allocation10], 0
    %26 = vsyncpa [#allocation13], 0
    %27 = vsyncpa [#allocation5], 0
    // Predicated region
    $region2: #{block_cache_forward.1} parent=1 // pred_check
      _
    $region3: #{block_cache_forward.1} parent=1 // pred_check_branch
      %29 = sbr.rel (0) target = $region5
    $region4: #{block_cache_forward.1} parent=1 // pred_region
      _
    $region5: #{block_cache_forward.1} parent=1 // pred_fallthru
      _
    // Predicated region
    $region6: #{block_cache_forward.1} parent=1 // pred_check
      _
    $region7: #{block_cache_forward.1} parent=1 // pred_check_branch
      %31 = sbr.rel (0) target = $region9
    $region8: #{block_cache_forward.1} parent=1 // pred_region
      _
    $region9: #{block_cache_forward.1} parent=1 // pred_fallthru
      _
    // Predicated region
    $region10: #{block_cache_forward.1} parent=1 // pred_check
      _
    $region11: #{block_cache_forward.1} parent=1 // pred_check_branch
      %33 = sbr.rel (0) target = $region13
    $region12: #{block_cache_forward.1} parent=1 // pred_region
      _
    $region13: #{block_cache_forward.1} parent=1 // pred_fallthru
      _
    // Predicated region
    $region14: #{block_cache_forward.1} parent=1 // pred_check
      _
    $region15: #{block_cache_forward.1} parent=1 // pred_check_branch
      %35 = sbr.rel (0) target = $region17
    $region16: #{block_cache_forward.1} parent=1 // pred_region
      _
    $region17: #{block_cache_forward.1} parent=1 // pred_fallthru
      _
    // Predicated region
    $region18: #{block_cache_forward.1} parent=1 // pred_check
      _
    $region19: #{block_cache_forward.1} parent=1 // pred_check_branch
      %37 = sbr.rel (0) target = $region21
    $region20: #{block_cache_forward.1} parent=1 // pred_region
      _
    $region21: #{block_cache_forward.1} parent=1 // pred_fallthru
      _
    // Predicated region
    $region22: #{block_cache_forward.1} parent=1 // pred_check
      _
    $region23: #{block_cache_forward.1} parent=1 // pred_check_branch
      %39 = sbr.rel (0) target = $region25
    $region24: #{block_cache_forward.1} parent=1 // pred_region
      _
    $region25: #{block_cache_forward.1} parent=1 // pred_fallthru
      _
    // Predicated region
    $region26: #{block_cache_forward.1} parent=1 // pred_check
      _
    $region27: #{block_cache_forward.1} parent=1 // pred_check_branch
      %41 = sbr.rel (0) target = $region29
    $region28: #{block_cache_forward.1} parent=1 // pred_region
      %s43 = ssub.s32 16, 16
      %44 = vsyncadd [#allocation4], %s43
      %s46 = sshll.u32 [#allocation3], 4
      %s47 = int_to_ptr.vmem [resolvable:$true] %s46
      %49 = dma.hbm_to_vmem [thread:$0]  %s6, 16, %s47, [#allocation4]
    $region29: #{block_cache_forward.1} parent=1 // pred_fallthru
      _
    // Predicated region
    $region30: #{block_cache_forward.1} parent=1 // pred_check
      _
    $region31: #{block_cache_forward.1} parent=1 // pred_check_branch
      %51 = sbr.rel (0) target = $region33
    $region32: #{block_cache_forward.1} parent=1 // pred_region
      %s53 = ssub.s32 16, 16
      %54 = vsyncadd [#allocation7], %s53
      %s56 = sshll.u32 [#allocation6], 4
      %s57 = int_to_ptr.vmem [resolvable:$true] %s56
      %59 = dma.hbm_to_vmem [thread:$0]  %s7, 16, %s57, [#allocation7]
    $region33: #{block_cache_forward.1} parent=1 // pred_fallthru
      _
    // Predicated region
    $region34: #{block_cache_forward.1} parent=1 // pred_check
      _
    $region35: #{block_cache_forward.1} parent=1 // pred_check_branch
      %61 = sbr.rel (0) target = $region37
    $region36: #{block_cache_forward.1} parent=1 // pred_region
      _
    $region37: #{block_cache_forward.1} parent=1 // pred_fallthru
      _
    // Predicated region
    $region38: #{block_cache_forward.1} parent=1 // pred_check
      _
    $region39: #{block_cache_forward.1} parent=1 // pred_check_branch
      %63 = sbr.rel (0) target = $region41
    $region40: #{block_cache_forward.1} parent=1 // pred_region
      %s65 = ssub.s32 16, 16
      %66 = vsyncadd [#allocation7], %s65
      %s68 = sshll.u32 [#allocation8], 4
      %s69 = int_to_ptr.vmem [resolvable:$true] %s68
      %71 = dma.hbm_to_vmem [thread:$0]  %s9, 16, %s69, [#allocation7]
    $region41: #{block_cache_forward.1} parent=1 // pred_fallthru
      _
    // Predicated region
    $region42: #{block_cache_forward.1} parent=1 // pred_check
      _
    $region43: #{block_cache_forward.1} parent=1 // pred_check_branch
      %73 = sbr.rel (0) target = $region45
    $region44: #{block_cache_forward.1} parent=1 // pred_region
      %s75 = ssub.s32 512, 512
      %76 = vsyncadd [#allocation10], %s75
      %s77 = sshll.u32 [#allocation9], 4
      %s78 = int_to_ptr.vmem [resolvable:$true] %s77
      %83 = dma.hbm_to_vmem [thread:$0]  %s10, 512, %s78, [#allocation10], 128, 128, 8
    $region45: #{block_cache_forward.1} parent=1 // pred_fallthru
      _
    // Predicated region
    $region46: #{block_cache_forward.1} parent=1 // pred_check
      _
    $region47: #{block_cache_forward.1} parent=1 // pred_check_branch
      %85 = sbr.rel (0) target = $region49
    $region48: #{block_cache_forward.1} parent=1 // pred_region
      %s87 = ssub.s32 16, 16
      %88 = vsyncadd [#allocation10], %s87
      %s90 = sshll.u32 [#allocation11], 4
      %s91 = int_to_ptr.vmem [resolvable:$true] %s90
      %93 = dma.hbm_to_vmem [thread:$0]  %s11, 16, %s91, [#allocation10]
    $region49: #{block_cache_forward.1} parent=1 // pred_fallthru
      _
    // Predicated region
    $region50: #{block_cache_forward.1} parent=1 // pred_check
      _
    $region51: #{block_cache_forward.1} parent=1 // pred_check_branch
      %95 = sbr.rel (0) target = $region53
    $region52: #{block_cache_forward.1} parent=1 // pred_region
      %s97 = ssub.s32 512, 512
      %98 = vsyncadd [#allocation13], %s97
      %s99 = sshll.u32 [#allocation12], 4
      %s100 = int_to_ptr.vmem [resolvable:$true] %s99
      %105 = dma.hbm_to_vmem [thread:$0]  %s12, 512, %s100, [#allocation13], 128, 128, 8
    $region53: #{block_cache_forward.1} parent=1 // pred_fallthru
      _
    // Predicated region
    $region54: #{block_cache_forward.1} parent=1 // pred_check
      _
    $region55: #{block_cache_forward.1} parent=1 // pred_check_branch
      %107 = sbr.rel (0) target = $region57
    $region56: #{block_cache_forward.1} parent=1 // pred_region
      _
    $region57: #{block_cache_forward.1} parent=1 // pred_fallthru
      _
    // Predicated region
    $region58: #{block_cache_forward.1} parent=1 // pred_check
      _
    $region59: #{block_cache_forward.1} parent=1 // pred_check_branch
      %109 = sbr.rel (0) target = $region61
    $region60: #{block_cache_forward.1} parent=1 // pred_region
      %110 = dma.done [#allocation4], 16
    $region61: #{block_cache_forward.1} parent=1 // pred_fallthru
      _
    // Predicated region
    $region62: #{block_cache_forward.1} parent=1 // pred_check
      _
    $region63: #{block_cache_forward.1} parent=1 // pred_check_branch
      %112 = sbr.rel (0) target = $region65
    $region64: #{block_cache_forward.1} parent=1 // pred_region
      %113 = dma.done [#allocation7], 16
    $region65: #{block_cache_forward.1} parent=1 // pred_fallthru
      _
    // Predicated region
    $region66: #{block_cache_forward.1} parent=1 // pred_check
      _
    $region67: #{block_cache_forward.1} parent=1 // pred_check_branch
      %115 = sbr.rel (0) target = $region69
    $region68: #{block_cache_forward.1} parent=1 // pred_region
      %116 = dma.done [#allocation7], 16
    $region69: #{block_cache_forward.1} parent=1 // pred_fallthru
      _
    // Predicated region
    $region70: #{block_cache_forward.1} parent=1 // pred_check
      _
    $region71: #{block_cache_forward.1} parent=1 // pred_check_branch
      %118 = sbr.rel (0) target = $region73
    $region72: #{block_cache_forward.1} parent=1 // pred_region
      %119 = dma.done [#allocation10], 512
    $region73: #{block_cache_forward.1} parent=1 // pred_fallthru
      _
    // Predicated region
    $region74: #{block_cache_forward.1} parent=1 // pred_check
      _
    $region75: #{block_cache_forward.1} parent=1 // pred_check_branch
      %121 = sbr.rel (0) target = $region77
    $region76: #{block_cache_forward.1} parent=1 // pred_region
      %122 = dma.done [#allocation10], 16
    $region77: #{block_cache_forward.1} parent=1 // pred_fallthru
      _
    // Predicated region
    $region78: #{block_cache_forward.1} parent=1 // pred_check
      _
    $region79: #{block_cache_forward.1} parent=1 // pred_check_branch
      %124 = sbr.rel (0) target = $region81
    $region80: #{block_cache_forward.1} parent=1 // pred_region
      %125 = dma.done [#allocation13], 512
    $region81: #{block_cache_forward.1} parent=1 // pred_fallthru
      _
    %v126 = vld [vmem:[%s1] sm:$0x1]
    %v127 = vmul.f32 %v126, %v126
    %vm128 = vcmask 253952
    %v129 = vsel %vm128, %v127, 0.0
    %130 = vadd.xlane.f32.xlu0 %v129
    %v131 = vpop.xlane.xlu0 %130
    %v132 = vrcp.pop 32.0
    %v133 = vmul.f32 %v131, %v132
    %v134 = vadd.f32 %v133, 1e-06
    %v135 = vrsqrt.pop %v134
    %v136 = vmul.f32 %v126, %v135
    %v137 = vld [vmem:[#allocation3] sm:$0x1]
    %v138 = vmul.f32 %v136, %v137
    %v139 = vld [vmem:[%s8] sm:$0xff]
    %v140 = vld [vmem:[%s8 + $0x8] sm:$0xff]
    %v141 = vld [vmem:[%s8 + $0x10] sm:$0xff]
    %v142 = vld [vmem:[%s8 + $0x18] sm:$0xff]
    %v143 = vld [vmem:[#allocation8] sm:$0x1]
    %vm144 = vcmask 261120
    %v146 = vsel %vm144, %v138, 0
    %148 = vmatprep.subr.mxu0 0.0
    %149 = vmatpush1.msra.mxu0 0.0
    %150 = vmatprep.subr.mxu0 0.0
    %151 = vmatpush1.msra.mxu0 0.0
    %152 = vmatprep.subr.mxu0 0.0
    %153 = vmatpush1.msra.mxu0 0.0
    %154 = vmatprep.subr.mxu0 0.0
    %155 = vmatpush1.msra.mxu0 0.0
    %156 = vmatprep.subr.mxu0 0.0
    %157 = vmatpush1.msra.mxu0 0.0
    %158 = vmatprep.subr.mxu0 0.0
    %159 = vmatpush1.msra.mxu0 0.0
    %160 = vmatprep.subr.mxu0 0.0
    %161 = vmatpush1.msra.mxu0 0.0
    %162 = vmatprep.subr.mxu0 0.0
    %163 = vmatpush1.msra.mxu0 0.0
    %164 = vmatprep.subr.mxu0 0.0
    %165 = vmatpush1.msra.mxu0 0.0
    %166 = vmatprep.subr.mxu0 0.0
    %167 = vmatpush1.msra.mxu0 0.0
    %168 = vmatprep.subr.mxu0 0.0
    %169 = vmatpush1.msra.mxu0 0.0
    %170 = vmatprep.subr.mxu0 0.0
    %171 = vmatpush1.msra.mxu0 0.0
    %172 = vmatprep.subr.mxu0 0.0
    %173 = vmatpush1.msra.mxu0 %v142
    %174 = vmatprep.subr.mxu0 0.0
    %175 = vmatpush1.msra.mxu0 %v141
    %176 = vmatprep.subr.mxu0 0.0
    %177 = vmatpush1.msra.mxu0 %v140
    %178 = vmatprep.subr.mxu0 0.0
    %179 = vmatpush1.msra.mxu0 %v139
    %180 = vmatprep.subr.mxu0 0.0
    %181 = vmatpush2.msra.mxu0 0.0
    %182 = vmatprep.subr.mxu0 0.0
    %183 = vmatpush2.msra.mxu0 0.0
    %184 = vmatprep.subr.mxu0 0.0
    %185 = vmatpush2.msra.mxu0 0.0
    %186 = vmatprep.subr.mxu0 0.0
    %187 = vmatpush2.msra.mxu0 0.0
    %188 = vmatprep.subr.mxu0 0.0
    %189 = vmatpush2.msra.mxu0 0.0
    %190 = vmatprep.subr.mxu0 0.0
    %191 = vmatpush2.msra.mxu0 0.0
    %192 = vmatprep.subr.mxu0 0.0
    %193 = vmatpush2.msra.mxu0 0.0
    %194 = vmatprep.subr.mxu0 0.0
    %195 = vmatpush2.msra.mxu0 0.0
    %196 = vmatprep.subr.mxu0 0.0
    %197 = vmatpush2.msra.mxu0 0.0
    %198 = vmatprep.subr.mxu0 0.0
    %199 = vmatpush2.msra.mxu0 0.0
    %200 = vmatprep.subr.mxu0 0.0
    %201 = vmatpush2.msra.mxu0 0.0
    %202 = vmatprep.subr.mxu0 0.0
    %203 = vmatpush2.msra.mxu0 0.0
    %204 = vmatprep.subr.mxu0 0.0
    %205 = vmatpush2.msra.mxu0 0.0
    %206 = vmatprep.subr.mxu0 0.0
    %207 = vmatpush2.msra.mxu0 0.0
    %208 = vmatprep.subr.mxu0 0.0
    %209 = vmatpush2.msra.mxu0 0.0
    %210 = vmatprep.subr.mxu0 0.0
    %211 = vmatpush2.msra.mxu0 0.0
    %212 = vmatprep.mubr.f32.mxu0 0.0
    %213 = vmatmul.mubr.f32.gmra.mxu0 %v146
    %v214 = vpop.f32.mrf.mxu0
    %v215 = vadd.f32 %v143, %v214
    %v216 = vpop.f32.mrf.mxu0
    %217 = vdwg.mxu0
    %s218 = sld [smem:[#allocation2]]
    %s219 = smul.u32 %s218, 8
    %s220 = scalar_lea.vmem %s2, %s219
    %v221 = vld [vmem:[%s220] sm:$0xff]
    %v222 = vld [vmem:[%s3] sm:$0x1]
    %224 = vrot.lane.b32.xlu0 %v215, 96
    %v225 = vpop.permute.xlu0 %224
    %vm226 = vcmask 64512
    %v227 = vsel %vm226, %v225, 0
    %229 = vmatprep.subr.mxu0 0.0
    %230 = vmatpush1.msra.mxu0 0.0
    %231 = vmatprep.subr.mxu0 0.0
    %232 = vmatpush1.msra.mxu0 0.0
    %233 = vmatprep.subr.mxu0 0.0
    %234 = vmatpush1.msra.mxu0 0.0
    %235 = vmatprep.subr.mxu0 0.0
    %236 = vmatpush1.msra.mxu0 0.0
    %237 = vmatprep.subr.mxu0 0.0
    %238 = vmatpush1.msra.mxu0 0.0
    %239 = vmatprep.subr.mxu0 0.0
    %240 = vmatpush1.msra.mxu0 0.0
    %241 = vmatprep.subr.mxu0 0.0
    %242 = vmatpush1.msra.mxu0 0.0
    %243 = vmatprep.subr.mxu0 0.0
    %244 = vmatpush1.msra.mxu0 0.0
    %245 = vmatprep.subr.mxu0 0.0
    %246 = vmatpush1.msra.mxu0 0.0
    %247 = vmatprep.subr.mxu0 0.0
    %248 = vmatpush1.msra.mxu0 0.0
    %249 = vmatprep.subr.mxu0 0.0
    %250 = vmatpush1.msra.mxu0 0.0
    %251 = vmatprep.subr.mxu0 0.0
    %252 = vmatpush1.msra.mxu0 0.0
    %253 = vmatprep.subr.mxu0 0.0
    %254 = vmatpush1.msra.mxu0 0.0
    %255 = vmatprep.subr.mxu0 0.0
    %256 = vmatpush1.msra.mxu0 0.0
    %257 = vmatprep.subr.mxu0 0.0
    %258 = vmatpush1.msra.mxu0 0.0
    %259 = vmatprep.subr.mxu0 0.0
    %260 = vmatpush1.msra.mxu0 %v221
    %261 = vmatprep.subr.mxu0 0.0
    %262 = vmatpush2.msra.mxu0 0.0
    %263 = vmatprep.subr.mxu0 0.0
    %264 = vmatpush2.msra.mxu0 0.0
    %265 = vmatprep.subr.mxu0 0.0
    %266 = vmatpush2.msra.mxu0 0.0
    %267 = vmatprep.subr.mxu0 0.0
    %268 = vmatpush2.msra.mxu0 0.0
    %269 = vmatprep.subr.mxu0 0.0
    %270 = vmatpush2.msra.mxu0 0.0
    %271 = vmatprep.subr.mxu0 0.0
    %272 = vmatpush2.msra.mxu0 0.0
    %273 = vmatprep.subr.mxu0 0.0
    %274 = vmatpush2.msra.mxu0 0.0
    %275 = vmatprep.subr.mxu0 0.0
    %276 = vmatpush2.msra.mxu0 0.0
    %277 = vmatprep.subr.mxu0 0.0
    %278 = vmatpush2.msra.mxu0 0.0
    %279 = vmatprep.subr.mxu0 0.0
    %280 = vmatpush2.msra.mxu0 0.0
    %281 = vmatprep.subr.mxu0 0.0
    %282 = vmatpush2.msra.mxu0 0.0
    %283 = vmatprep.subr.mxu0 0.0
    %284 = vmatpush2.msra.mxu0 0.0
    %285 = vmatprep.subr.mxu0 0.0
    %286 = vmatpush2.msra.mxu0 0.0
    %287 = vmatprep.subr.mxu0 0.0
    %288 = vmatpush2.msra.mxu0 0.0
    %289 = vmatprep.subr.mxu0 0.0
    %290 = vmatpush2.msra.mxu0 0.0
    %291 = vmatprep.subr.mxu0 0.0
    %292 = vmatpush2.msra.mxu0 0.0
    %293 = vmatprep.mubr.f32.mxu0 0.0
    %294 = vmatmul.mubr.f32.gmra.mxu0 %v227
    %v295 = vpop.f32.mrf.mxu0
    %v296 = vadd.f32 0.0, %v295
    %v297 = vpop.f32.mrf.mxu0
    %298 = vdwg.mxu0
    %v299 = vrot.slane %v215, 7
    %300 = vrot.lane.b32.xlu0 %v299, 120
    %v301 = vpop.permute.xlu0 %300
    %vm303 = vcmask 1040384
    %v304 = vsel %vm303, %v215, %v301
    %v306 = vsel %vm226, %v304, 0
    %308 = vmatprep.subr.mxu0 0.0
    %309 = vmatpush1.msra.mxu0 0.0
    %310 = vmatprep.subr.mxu0 0.0
    %311 = vmatpush1.msra.mxu0 0.0
    %312 = vmatprep.subr.mxu0 0.0
    %313 = vmatpush1.msra.mxu0 0.0
    %314 = vmatprep.subr.mxu0 0.0
    %315 = vmatpush1.msra.mxu0 0.0
    %316 = vmatprep.subr.mxu0 0.0
    %317 = vmatpush1.msra.mxu0 0.0
    %318 = vmatprep.subr.mxu0 0.0
    %319 = vmatpush1.msra.mxu0 0.0
    %320 = vmatprep.subr.mxu0 0.0
    %321 = vmatpush1.msra.mxu0 0.0
    %322 = vmatprep.subr.mxu0 0.0
    %323 = vmatpush1.msra.mxu0 0.0
    %324 = vmatprep.subr.mxu0 0.0
    %325 = vmatpush1.msra.mxu0 0.0
    %326 = vmatprep.subr.mxu0 0.0
    %327 = vmatpush1.msra.mxu0 0.0
    %328 = vmatprep.subr.mxu0 0.0
    %329 = vmatpush1.msra.mxu0 0.0
    %330 = vmatprep.subr.mxu0 0.0
    %331 = vmatpush1.msra.mxu0 0.0
    %332 = vmatprep.subr.mxu0 0.0
    %333 = vmatpush1.msra.mxu0 0.0
    %334 = vmatprep.subr.mxu0 0.0
    %335 = vmatpush1.msra.mxu0 0.0
    %336 = vmatprep.subr.mxu0 0.0
    %337 = vmatpush1.msra.mxu0 0.0
    %338 = vmatprep.subr.mxu0 0.0
    %339 = vmatpush1.msra.mxu0 %v221
    %340 = vmatprep.subr.mxu0 0.0
    %341 = vmatpush2.msra.mxu0 0.0
    %342 = vmatprep.subr.mxu0 0.0
    %343 = vmatpush2.msra.mxu0 0.0
    %344 = vmatprep.subr.mxu0 0.0
    %345 = vmatpush2.msra.mxu0 0.0
    %346 = vmatprep.subr.mxu0 0.0
    %347 = vmatpush2.msra.mxu0 0.0
    %348 = vmatprep.subr.mxu0 0.0
    %349 = vmatpush2.msra.mxu0 0.0
    %350 = vmatprep.subr.mxu0 0.0
    %351 = vmatpush2.msra.mxu0 0.0
    %352 = vmatprep.subr.mxu0 0.0
    %353 = vmatpush2.msra.mxu0 0.0
    %354 = vmatprep.subr.mxu0 0.0
    %355 = vmatpush2.msra.mxu0 0.0
    %356 = vmatprep.subr.mxu0 0.0
    %357 = vmatpush2.msra.mxu0 0.0
    %358 = vmatprep.subr.mxu0 0.0
    %359 = vmatpush2.msra.mxu0 0.0
    %360 = vmatprep.subr.mxu0 0.0
    %361 = vmatpush2.msra.mxu0 0.0
    %362 = vmatprep.subr.mxu0 0.0
    %363 = vmatpush2.msra.mxu0 0.0
    %364 = vmatprep.subr.mxu0 0.0
    %365 = vmatpush2.msra.mxu0 0.0
    %366 = vmatprep.subr.mxu0 0.0
    %367 = vmatpush2.msra.mxu0 0.0
    %368 = vmatprep.subr.mxu0 0.0
    %369 = vmatpush2.msra.mxu0 0.0
    %370 = vmatprep.subr.mxu0 0.0
    %371 = vmatpush2.msra.mxu0 0.0
    %372 = vmatprep.mubr.f32.mxu0 0.0
    %373 = vmatmul.mubr.f32.gmra.mxu0 %v306
    %v374 = vpop.f32.mrf.mxu0
    %v375 = vadd.f32 0.0, %v374
    %v376 = vpop.f32.mrf.mxu0
    %377 = vdwg.mxu0
    %v378 = vld [vmem:[%s4] sm:$0x1]
    %v379 = vld [vmem:[%s4 + $0x2] sm:$0x1]
    %v380 = vld [vmem:[%s4 + $0x4] sm:$0x1]
    %v381 = vld [vmem:[%s4 + $0x6] sm:$0x1]
    %v382 = vld [vmem:[%s4 + $0x8] sm:$0x1]
    %v383 = vld [vmem:[%s4 + $0xa] sm:$0x1]
    %v384 = vld [vmem:[%s4 + $0xc] sm:$0x1]
    %v385 = vld [vmem:[%s4 + $0xe] sm:$0x1]
    %v394 = vrot.slane %v379, 7
    %vm395 = vcmask 1041409
    %v396 = vsel %vm395, %v394, %v378
    %v397 = vrot.slane %v380, 6
    %vm398 = vcmask 1042434
    %v399 = vsel %vm398, %v397, %v396
    %v400 = vrot.slane %v381, 5
    %vm401 = vcmask 1043459
    %v402 = vsel %vm401, %v400, %v399
    %v403 = vrot.slane %v382, 4
    %vm404 = vcmask 1044484
    %v405 = vsel %vm404, %v403, %v402
    %v406 = vrot.slane %v383, 3
    %vm407 = vcmask 1045509
    %v408 = vsel %vm407, %v406, %v405
    %v409 = vrot.slane %v384, 2
    %vm410 = vcmask 1046534
    %v411 = vsel %vm410, %v409, %v408
    %v412 = vrot.slane %v385, 1
    %vm413 = vcmask 1047559
    %v414 = vsel %vm413, %v412, %v411
    %v415 = vld [vmem:[%s5] sm:$0x1]
    %v416 = vld [vmem:[%s5 + $0x2] sm:$0x1]
    %v417 = vld [vmem:[%s5 + $0x4] sm:$0x1]
    %v418 = vld [vmem:[%s5 + $0x6] sm:$0x1]
    %v419 = vld [vmem:[%s5 + $0x8] sm:$0x1]
    %v420 = vld [vmem:[%s5 + $0xa] sm:$0x1]
    %v421 = vld [vmem:[%s5 + $0xc] sm:$0x1]
    %v422 = vld [vmem:[%s5 + $0xe] sm:$0x1]
    %v431 = vrot.slane %v416, 7
    %v432 = vsel %vm395, %v431, %v415
    %v433 = vrot.slane %v417, 6
    %v434 = vsel %vm398, %v433, %v432
    %v435 = vrot.slane %v418, 5
    %v436 = vsel %vm401, %v435, %v434
    %v437 = vrot.slane %v419, 4
    %v438 = vsel %vm404, %v437, %v436
    %v439 = vrot.slane %v420, 3
    %v440 = vsel %vm407, %v439, %v438
    %v441 = vrot.slane %v421, 2
    %v442 = vsel %vm410, %v441, %v440
    %v443 = vrot.slane %v422, 1
    %v444 = vsel %vm413, %v443, %v442
    %446 = vrot.lane.b32.xlu0 %v215, 80
    %v447 = vpop.permute.xlu0 %446
    %v449 = vsel %vm226, %v375, 0
    %v451 = vsel %vm226, %v414, 0
    %v454 = vsel %vm226, %v296, 0
    %456 = vmatprep.subr.mxu0 0.0
    %457 = vmatpush1.xpose.msra.mxu0 0.0
    %458 = vmatprep.subr.mxu0 0.0
    %459 = vmatpush1.xpose.msra.mxu0 0.0
    %460 = vmatprep.subr.mxu0 0.0
    %461 = vmatpush1.xpose.msra.mxu0 0.0
    %462 = vmatprep.subr.mxu0 0.0
    %463 = vmatpush1.xpose.msra.mxu0 0.0
    %464 = vmatprep.subr.mxu0 0.0
    %465 = vmatpush1.xpose.msra.mxu0 0.0
    %466 = vmatprep.subr.mxu0 0.0
    %467 = vmatpush1.xpose.msra.mxu0 0.0
    %468 = vmatprep.subr.mxu0 0.0
    %469 = vmatpush1.xpose.msra.mxu0 0.0
    %470 = vmatprep.subr.mxu0 0.0
    %471 = vmatpush1.xpose.msra.mxu0 0.0
    %472 = vmatprep.subr.mxu0 0.0
    %473 = vmatpush1.xpose.msra.mxu0 0.0
    %474 = vmatprep.subr.mxu0 0.0
    %475 = vmatpush1.xpose.msra.mxu0 0.0
    %476 = vmatprep.subr.mxu0 0.0
    %477 = vmatpush1.xpose.msra.mxu0 0.0
    %478 = vmatprep.subr.mxu0 0.0
    %479 = vmatpush1.xpose.msra.mxu0 0.0
    %480 = vmatprep.subr.mxu0 0.0
    %481 = vmatpush1.xpose.msra.mxu0 0.0
    %482 = vmatprep.subr.mxu0 0.0
    %483 = vmatpush1.xpose.msra.mxu0 0.0
    %484 = vmatprep.subr.mxu0 0.0
    %485 = vmatpush1.xpose.msra.mxu0 %v454
    %486 = vmatprep.subr.mxu0 0.0
    %487 = vmatpush1.xpose.msra.mxu0 %v451
    %488 = vmatprep.subr.mxu0 0.0
    %489 = vmatpush2.xpose.msra.mxu0 0.0
    %490 = vmatprep.subr.mxu0 0.0
    %491 = vmatpush2.xpose.msra.mxu0 0.0
    %492 = vmatprep.subr.mxu0 0.0
    %493 = vmatpush2.xpose.msra.mxu0 0.0
    %494 = vmatprep.subr.mxu0 0.0
    %495 = vmatpush2.xpose.msra.mxu0 0.0
    %496 = vmatprep.subr.mxu0 0.0
    %497 = vmatpush2.xpose.msra.mxu0 0.0
    %498 = vmatprep.subr.mxu0 0.0
    %499 = vmatpush2.xpose.msra.mxu0 0.0
    %500 = vmatprep.subr.mxu0 0.0
    %501 = vmatpush2.xpose.msra.mxu0 0.0
    %502 = vmatprep.subr.mxu0 0.0
    %503 = vmatpush2.xpose.msra.mxu0 0.0
    %504 = vmatprep.subr.mxu0 0.0
    %505 = vmatpush2.xpose.msra.mxu0 0.0
    %506 = vmatprep.subr.mxu0 0.0
    %507 = vmatpush2.xpose.msra.mxu0 0.0
    %508 = vmatprep.subr.mxu0 0.0
    %509 = vmatpush2.xpose.msra.mxu0 0.0
    %510 = vmatprep.subr.mxu0 0.0
    %511 = vmatpush2.xpose.msra.mxu0 0.0
    %512 = vmatprep.subr.mxu0 0.0
    %513 = vmatpush2.xpose.msra.mxu0 0.0
    %514 = vmatprep.subr.mxu0 0.0
    %515 = vmatpush2.xpose.msra.mxu0 0.0
    %516 = vmatprep.subr.mxu0 0.0
    %517 = vmatpush2.xpose.msra.mxu0 0.0
    %518 = vmatprep.subr.mxu0 0.0
    %519 = vmatpush2.xpose.msra.mxu0 0.0
    %520 = vmatprep.mubr.f32.mxu0 0.0
    %521 = vmatmul.mubr.f32.gmra.mxu0 %v449
    %v522 = vpop.f32.mrf.mxu0
    %v523 = vadd.f32 0.0, %v522
    %v524 = vpop.f32.mrf.mxu0
    %525 = vdwg.mxu0
    %v526 = vmul.f32 %v523, 0.35355338
    %v528 = vlaneseq
    %v529 = vshrl.u32 %v528, 7
    %v530 = vsub.s32 0, %v529
    %v531 = vrot.slane %v222, %v530
    %v533 = vadd.f32 %v526, %v531
    %vm534 = vcmask 66560
    %v535 = vsel %vm534, %v533, -inf
    %536 = vmax.xlane.f32.xlu0 %v535
    %v537 = vpop.xlane.xlu0 %536
    %v538 = vsub.f32 %v533, %v537
    %v539 = vmul.f32 %v538, 1.442695
    %v540 = vpow.pop %v539
    %v541 = vsel %vm534, %v540, 0.0
    %542 = vadd.xlane.f32.xlu0 %v541
    %v543 = vpop.xlane.xlu0 %542
    %v544 = vrcp.pop %v543
    %vm545 = vcmask 72704
    %v547 = vsel %vm545, %v540, 0
    %v549 = vsel %vm303, %v447, 0
    %551 = vmatprep.subr.mxu0 0.0
    %552 = vmatpush1.msra.mxu0 0.0
    %553 = vmatprep.subr.mxu0 0.0
    %554 = vmatpush1.msra.mxu0 0.0
    %555 = vmatprep.subr.mxu0 0.0
    %556 = vmatpush1.msra.mxu0 0.0
    %557 = vmatprep.subr.mxu0 0.0
    %558 = vmatpush1.msra.mxu0 0.0
    %559 = vmatprep.subr.mxu0 0.0
    %560 = vmatpush1.msra.mxu0 0.0
    %561 = vmatprep.subr.mxu0 0.0
    %562 = vmatpush1.msra.mxu0 0.0
    %563 = vmatprep.subr.mxu0 0.0
    %564 = vmatpush1.msra.mxu0 0.0
    %565 = vmatprep.subr.mxu0 0.0
    %566 = vmatpush1.msra.mxu0 0.0
    %567 = vmatprep.subr.mxu0 0.0
    %568 = vmatpush1.msra.mxu0 0.0
    %569 = vmatprep.subr.mxu0 0.0
    %570 = vmatpush1.msra.mxu0 0.0
    %571 = vmatprep.subr.mxu0 0.0
    %572 = vmatpush1.msra.mxu0 0.0
    %573 = vmatprep.subr.mxu0 0.0
    %574 = vmatpush1.msra.mxu0 0.0
    %575 = vmatprep.subr.mxu0 0.0
    %576 = vmatpush1.msra.mxu0 0.0
    %577 = vmatprep.subr.mxu0 0.0
    %578 = vmatpush1.msra.mxu0 0.0
    %579 = vmatprep.subr.mxu0 0.0
    %580 = vmatpush1.msra.mxu0 %v549
    %581 = vmatprep.subr.mxu0 0.0
    %582 = vmatpush1.msra.mxu0 %v444
    %583 = vmatprep.subr.mxu0 0.0
    %584 = vmatpush2.msra.mxu0 0.0
    %585 = vmatprep.subr.mxu0 0.0
    %586 = vmatpush2.msra.mxu0 0.0
    %587 = vmatprep.subr.mxu0 0.0
    %588 = vmatpush2.msra.mxu0 0.0
    %589 = vmatprep.subr.mxu0 0.0
    %590 = vmatpush2.msra.mxu0 0.0
    %591 = vmatprep.subr.mxu0 0.0
    %592 = vmatpush2.msra.mxu0 0.0
    %593 = vmatprep.subr.mxu0 0.0
    %594 = vmatpush2.msra.mxu0 0.0
    %595 = vmatprep.subr.mxu0 0.0
    %596 = vmatpush2.msra.mxu0 0.0
    %597 = vmatprep.subr.mxu0 0.0
    %598 = vmatpush2.msra.mxu0 0.0
    %599 = vmatprep.subr.mxu0 0.0
    %600 = vmatpush2.msra.mxu0 0.0
    %601 = vmatprep.subr.mxu0 0.0
    %602 = vmatpush2.msra.mxu0 0.0
    %603 = vmatprep.subr.mxu0 0.0
    %604 = vmatpush2.msra.mxu0 0.0
    %605 = vmatprep.subr.mxu0 0.0
    %606 = vmatpush2.msra.mxu0 0.0
    %607 = vmatprep.subr.mxu0 0.0
    %608 = vmatpush2.msra.mxu0 0.0
    %609 = vmatprep.subr.mxu0 0.0
    %610 = vmatpush2.msra.mxu0 0.0
    %611 = vmatprep.subr.mxu0 0.0
    %612 = vmatpush2.msra.mxu0 0.0
    %613 = vmatprep.subr.mxu0 0.0
    %614 = vmatpush2.msra.mxu0 0.0
    %615 = vmatprep.mubr.f32.mxu0 0.0
    %616 = vmatmul.mubr.f32.gmra.mxu0 %v547
    %v617 = vpop.f32.mrf.mxu0
    %v618 = vadd.f32 0.0, %v617
    %v619 = vpop.f32.mrf.mxu0
    %620 = vdwg.mxu0
    %v621 = vmul.f32 %v618, %v544
    %622 = vrot.lane.b32.xlu0 %v215, 88
    %v623 = vpop.permute.xlu0 %622
    %v624 = vsel %vm226, %v623, 0
    %626 = vmatprep.subr.mxu0 0.0
    %627 = vmatpush1.msra.mxu0 0.0
    %628 = vmatprep.subr.mxu0 0.0
    %629 = vmatpush1.msra.mxu0 0.0
    %630 = vmatprep.subr.mxu0 0.0
    %631 = vmatpush1.msra.mxu0 0.0
    %632 = vmatprep.subr.mxu0 0.0
    %633 = vmatpush1.msra.mxu0 0.0
    %634 = vmatprep.subr.mxu0 0.0
    %635 = vmatpush1.msra.mxu0 0.0
    %636 = vmatprep.subr.mxu0 0.0
    %637 = vmatpush1.msra.mxu0 0.0
    %638 = vmatprep.subr.mxu0 0.0
    %639 = vmatpush1.msra.mxu0 0.0
    %640 = vmatprep.subr.mxu0 0.0
    %641 = vmatpush1.msra.mxu0 0.0
    %642 = vmatprep.subr.mxu0 0.0
    %643 = vmatpush1.msra.mxu0 0.0
    %644 = vmatprep.subr.mxu0 0.0
    %645 = vmatpush1.msra.mxu0 0.0
    %646 = vmatprep.subr.mxu0 0.0
    %647 = vmatpush1.msra.mxu0 0.0
    %648 = vmatprep.subr.mxu0 0.0
    %649 = vmatpush1.msra.mxu0 0.0
    %650 = vmatprep.subr.mxu0 0.0
    %651 = vmatpush1.msra.mxu0 0.0
    %652 = vmatprep.subr.mxu0 0.0
    %653 = vmatpush1.msra.mxu0 0.0
    %654 = vmatprep.subr.mxu0 0.0
    %655 = vmatpush1.msra.mxu0 0.0
    %656 = vmatprep.subr.mxu0 0.0
    %657 = vmatpush1.msra.mxu0 %v221
    %658 = vmatprep.subr.mxu0 0.0
    %659 = vmatpush2.msra.mxu0 0.0
    %660 = vmatprep.subr.mxu0 0.0
    %661 = vmatpush2.msra.mxu0 0.0
    %662 = vmatprep.subr.mxu0 0.0
    %663 = vmatpush2.msra.mxu0 0.0
    %664 = vmatprep.subr.mxu0 0.0
    %665 = vmatpush2.msra.mxu0 0.0
    %666 = vmatprep.subr.mxu0 0.0
    %667 = vmatpush2.msra.mxu0 0.0
    %668 = vmatprep.subr.mxu0 0.0
    %669 = vmatpush2.msra.mxu0 0.0
    %670 = vmatprep.subr.mxu0 0.0
    %671 = vmatpush2.msra.mxu0 0.0
    %672 = vmatprep.subr.mxu0 0.0
    %673 = vmatpush2.msra.mxu0 0.0
    %674 = vmatprep.subr.mxu0 0.0
    %675 = vmatpush2.msra.mxu0 0.0
    %676 = vmatprep.subr.mxu0 0.0
    %677 = vmatpush2.msra.mxu0 0.0
    %678 = vmatprep.subr.mxu0 0.0
    %679 = vmatpush2.msra.mxu0 0.0
    %680 = vmatprep.subr.mxu0 0.0
    %681 = vmatpush2.msra.mxu0 0.0
    %682 = vmatprep.subr.mxu0 0.0
    %683 = vmatpush2.msra.mxu0 0.0
    %684 = vmatprep.subr.mxu0 0.0
    %685 = vmatpush2.msra.mxu0 0.0
    %686 = vmatprep.subr.mxu0 0.0
    %687 = vmatpush2.msra.mxu0 0.0
    %688 = vmatprep.subr.mxu0 0.0
    %689 = vmatpush2.msra.mxu0 0.0
    %690 = vmatprep.mubr.f32.mxu0 0.0
    %691 = vmatmul.mubr.f32.gmra.mxu0 %v624
    %v692 = vpop.f32.mrf.mxu0
    %v693 = vadd.f32 0.0, %v692
    %v694 = vpop.f32.mrf.mxu0
    %695 = vdwg.mxu0
    %696 = vrot.lane.b32.xlu0 %v304, 112
    %v697 = vpop.permute.xlu0 %696
    %v698 = vsel %vm226, %v697, 0
    %700 = vmatprep.subr.mxu0 0.0
    %701 = vmatpush1.msra.mxu0 0.0
    %702 = vmatprep.subr.mxu0 0.0
    %703 = vmatpush1.msra.mxu0 0.0
    %704 = vmatprep.subr.mxu0 0.0
    %705 = vmatpush1.msra.mxu0 0.0
    %706 = vmatprep.subr.mxu0 0.0
    %707 = vmatpush1.msra.mxu0 0.0
    %708 = vmatprep.subr.mxu0 0.0
    %709 = vmatpush1.msra.mxu0 0.0
    %710 = vmatprep.subr.mxu0 0.0
    %711 = vmatpush1.msra.mxu0 0.0
    %712 = vmatprep.subr.mxu0 0.0
    %713 = vmatpush1.msra.mxu0 0.0
    %714 = vmatprep.subr.mxu0 0.0
    %715 = vmatpush1.msra.mxu0 0.0
    %716 = vmatprep.subr.mxu0 0.0
    %717 = vmatpush1.msra.mxu0 0.0
    %718 = vmatprep.subr.mxu0 0.0
    %719 = vmatpush1.msra.mxu0 0.0
    %720 = vmatprep.subr.mxu0 0.0
    %721 = vmatpush1.msra.mxu0 0.0
    %722 = vmatprep.subr.mxu0 0.0
    %723 = vmatpush1.msra.mxu0 0.0
    %724 = vmatprep.subr.mxu0 0.0
    %725 = vmatpush1.msra.mxu0 0.0
    %726 = vmatprep.subr.mxu0 0.0
    %727 = vmatpush1.msra.mxu0 0.0
    %728 = vmatprep.subr.mxu0 0.0
    %729 = vmatpush1.msra.mxu0 0.0
    %730 = vmatprep.subr.mxu0 0.0
    %731 = vmatpush1.msra.mxu0 %v221
    %732 = vmatprep.subr.mxu0 0.0
    %733 = vmatpush2.msra.mxu0 0.0
    %734 = vmatprep.subr.mxu0 0.0
    %735 = vmatpush2.msra.mxu0 0.0
    %736 = vmatprep.subr.mxu0 0.0
    %737 = vmatpush2.msra.mxu0 0.0
    %738 = vmatprep.subr.mxu0 0.0
    %739 = vmatpush2.msra.mxu0 0.0
    %740 = vmatprep.subr.mxu0 0.0
    %741 = vmatpush2.msra.mxu0 0.0
    %742 = vmatprep.subr.mxu0 0.0
    %743 = vmatpush2.msra.mxu0 0.0
    %744 = vmatprep.subr.mxu0 0.0
    %745 = vmatpush2.msra.mxu0 0.0
    %746 = vmatprep.subr.mxu0 0.0
    %747 = vmatpush2.msra.mxu0 0.0
    %748 = vmatprep.subr.mxu0 0.0
    %749 = vmatpush2.msra.mxu0 0.0
    %750 = vmatprep.subr.mxu0 0.0
    %751 = vmatpush2.msra.mxu0 0.0
    %752 = vmatprep.subr.mxu0 0.0
    %753 = vmatpush2.msra.mxu0 0.0
    %754 = vmatprep.subr.mxu0 0.0
    %755 = vmatpush2.msra.mxu0 0.0
    %756 = vmatprep.subr.mxu0 0.0
    %757 = vmatpush2.msra.mxu0 0.0
    %758 = vmatprep.subr.mxu0 0.0
    %759 = vmatpush2.msra.mxu0 0.0
    %760 = vmatprep.subr.mxu0 0.0
    %761 = vmatpush2.msra.mxu0 0.0
    %762 = vmatprep.subr.mxu0 0.0
    %763 = vmatpush2.msra.mxu0 0.0
    %764 = vmatprep.mubr.f32.mxu0 0.0
    %765 = vmatmul.mubr.f32.gmra.mxu0 %v698
    %v766 = vpop.f32.mrf.mxu0
    %v767 = vadd.f32 0.0, %v766
    %v768 = vpop.f32.mrf.mxu0
    %769 = vdwg.mxu0
    %v770 = vld [vmem:[%s4 + $0x1] sm:$0x1]
    %v771 = vld [vmem:[%s4 + $0x3] sm:$0x1]
    %v772 = vld [vmem:[%s4 + $0x5] sm:$0x1]
    %v773 = vld [vmem:[%s4 + $0x7] sm:$0x1]
    %v774 = vld [vmem:[%s4 + $0x9] sm:$0x1]
    %v775 = vld [vmem:[%s4 + $0xb] sm:$0x1]
    %v776 = vld [vmem:[%s4 + $0xd] sm:$0x1]
    %v777 = vld [vmem:[%s4 + $0xf] sm:$0x1]
    %v786 = vrot.slane %v771, 7
    %v787 = vsel %vm395, %v786, %v770
    %v788 = vrot.slane %v772, 6
    %v789 = vsel %vm398, %v788, %v787
    %v790 = vrot.slane %v773, 5
    %v791 = vsel %vm401, %v790, %v789
    %v792 = vrot.slane %v774, 4
    %v793 = vsel %vm404, %v792, %v791
    %v794 = vrot.slane %v775, 3
    %v795 = vsel %vm407, %v794, %v793
    %v796 = vrot.slane %v776, 2
    %v797 = vsel %vm410, %v796, %v795
    %v798 = vrot.slane %v777, 1
    %v799 = vsel %vm413, %v798, %v797
    %v800 = vld [vmem:[%s5 + $0x1] sm:$0x1]
    %v801 = vld [vmem:[%s5 + $0x3] sm:$0x1]
    %v802 = vld [vmem:[%s5 + $0x5] sm:$0x1]
    %v803 = vld [vmem:[%s5 + $0x7] sm:$0x1]
    %v804 = vld [vmem:[%s5 + $0x9] sm:$0x1]
    %v805 = vld [vmem:[%s5 + $0xb] sm:$0x1]
    %v806 = vld [vmem:[%s5 + $0xd] sm:$0x1]
    %v807 = vld [vmem:[%s5 + $0xf] sm:$0x1]
    %v816 = vrot.slane %v801, 7
    %v817 = vsel %vm395, %v816, %v800
    %v818 = vrot.slane %v802, 6
    %v819 = vsel %vm398, %v818, %v817
    %v820 = vrot.slane %v803, 5
    %v821 = vsel %vm401, %v820, %v819
    %v822 = vrot.slane %v804, 4
    %v823 = vsel %vm404, %v822, %v821
    %v824 = vrot.slane %v805, 3
    %v825 = vsel %vm407, %v824, %v823
    %v826 = vrot.slane %v806, 2
    %v827 = vsel %vm410, %v826, %v825
    %v828 = vrot.slane %v807, 1
    %v829 = vsel %vm413, %v828, %v827
    %831 = vrot.lane.b32.xlu0 %v215, 72
    %v832 = vpop.permute.xlu0 %831
    %v834 = vsel %vm226, %v767, 0
    %v836 = vsel %vm226, %v799, 0
    %v839 = vsel %vm226, %v693, 0
    %841 = vmatprep.subr.mxu0 0.0
    %842 = vmatpush1.xpose.msra.mxu0 0.0
    %843 = vmatprep.subr.mxu0 0.0
    %844 = vmatpush1.xpose.msra.mxu0 0.0
    %845 = vmatprep.subr.mxu0 0.0
    %846 = vmatpush1.xpose.msra.mxu0 0.0
    %847 = vmatprep.subr.mxu0 0.0
    %848 = vmatpush1.xpose.msra.mxu0 0.0
    %849 = vmatprep.subr.mxu0 0.0
    %850 = vmatpush1.xpose.msra.mxu0 0.0
    %851 = vmatprep.subr.mxu0 0.0
    %852 = vmatpush1.xpose.msra.mxu0 0.0
    %853 = vmatprep.subr.mxu0 0.0
    %854 = vmatpush1.xpose.msra.mxu0 0.0
    %855 = vmatprep.subr.mxu0 0.0
    %856 = vmatpush1.xpose.msra.mxu0 0.0
    %857 = vmatprep.subr.mxu0 0.0
    %858 = vmatpush1.xpose.msra.mxu0 0.0
    %859 = vmatprep.subr.mxu0 0.0
    %860 = vmatpush1.xpose.msra.mxu0 0.0
    %861 = vmatprep.subr.mxu0 0.0
    %862 = vmatpush1.xpose.msra.mxu0 0.0
    %863 = vmatprep.subr.mxu0 0.0
    %864 = vmatpush1.xpose.msra.mxu0 0.0
    %865 = vmatprep.subr.mxu0 0.0
    %866 = vmatpush1.xpose.msra.mxu0 0.0
    %867 = vmatprep.subr.mxu0 0.0
    %868 = vmatpush1.xpose.msra.mxu0 0.0
    %869 = vmatprep.subr.mxu0 0.0
    %870 = vmatpush1.xpose.msra.mxu0 %v839
    %871 = vmatprep.subr.mxu0 0.0
    %872 = vmatpush1.xpose.msra.mxu0 %v836
    %873 = vmatprep.subr.mxu0 0.0
    %874 = vmatpush2.xpose.msra.mxu0 0.0
    %875 = vmatprep.subr.mxu0 0.0
    %876 = vmatpush2.xpose.msra.mxu0 0.0
    %877 = vmatprep.subr.mxu0 0.0
    %878 = vmatpush2.xpose.msra.mxu0 0.0
    %879 = vmatprep.subr.mxu0 0.0
    %880 = vmatpush2.xpose.msra.mxu0 0.0
    %881 = vmatprep.subr.mxu0 0.0
    %882 = vmatpush2.xpose.msra.mxu0 0.0
    %883 = vmatprep.subr.mxu0 0.0
    %884 = vmatpush2.xpose.msra.mxu0 0.0
    %885 = vmatprep.subr.mxu0 0.0
    %886 = vmatpush2.xpose.msra.mxu0 0.0
    %887 = vmatprep.subr.mxu0 0.0
    %888 = vmatpush2.xpose.msra.mxu0 0.0
    %889 = vmatprep.subr.mxu0 0.0
    %890 = vmatpush2.xpose.msra.mxu0 0.0
    %891 = vmatprep.subr.mxu0 0.0
    %892 = vmatpush2.xpose.msra.mxu0 0.0
    %893 = vmatprep.subr.mxu0 0.0
    %894 = vmatpush2.xpose.msra.mxu0 0.0
    %895 = vmatprep.subr.mxu0 0.0
    %896 = vmatpush2.xpose.msra.mxu0 0.0
    %897 = vmatprep.subr.mxu0 0.0
    %898 = vmatpush2.xpose.msra.mxu0 0.0
    %899 = vmatprep.subr.mxu0 0.0
    %900 = vmatpush2.xpose.msra.mxu0 0.0
    %901 = vmatprep.subr.mxu0 0.0
    %902 = vmatpush2.xpose.msra.mxu0 0.0
    %903 = vmatprep.subr.mxu0 0.0
    %904 = vmatpush2.xpose.msra.mxu0 0.0
    %905 = vmatprep.mubr.f32.mxu0 0.0
    %906 = vmatmul.mubr.f32.gmra.mxu0 %v834
    %v907 = vpop.f32.mrf.mxu0
    %v908 = vadd.f32 0.0, %v907
    %v909 = vpop.f32.mrf.mxu0
    %910 = vdwg.mxu0
    %v911 = vmul.f32 %v908, 0.35355338
    %v912 = vadd.f32 %v911, %v531
    %v913 = vsel %vm534, %v912, -inf
    %914 = vmax.xlane.f32.xlu0 %v913
    %v915 = vpop.xlane.xlu0 %914
    %v916 = vsub.f32 %v912, %v915
    %v917 = vmul.f32 %v916, 1.442695
    %v918 = vpow.pop %v917
    %v919 = vsel %vm534, %v918, 0.0
    %920 = vadd.xlane.f32.xlu0 %v919
    %v921 = vpop.xlane.xlu0 %920
    %v922 = vrcp.pop %v921
    %v924 = vsel %vm545, %v918, 0
    %v926 = vsel %vm303, %v832, 0
    %928 = vmatprep.subr.mxu0 0.0
    %929 = vmatpush1.msra.mxu0 0.0
    %930 = vmatprep.subr.mxu0 0.0
    %931 = vmatpush1.msra.mxu0 0.0
    %932 = vmatprep.subr.mxu0 0.0
    %933 = vmatpush1.msra.mxu0 0.0
    %934 = vmatprep.subr.mxu0 0.0
    %935 = vmatpush1.msra.mxu0 0.0
    %936 = vmatprep.subr.mxu0 0.0
    %937 = vmatpush1.msra.mxu0 0.0
    %938 = vmatprep.subr.mxu0 0.0
    %939 = vmatpush1.msra.mxu0 0.0
    %940 = vmatprep.subr.mxu0 0.0
    %941 = vmatpush1.msra.mxu0 0.0
    %942 = vmatprep.subr.mxu0 0.0
    %943 = vmatpush1.msra.mxu0 0.0
    %944 = vmatprep.subr.mxu0 0.0
    %945 = vmatpush1.msra.mxu0 0.0
    %946 = vmatprep.subr.mxu0 0.0
    %947 = vmatpush1.msra.mxu0 0.0
    %948 = vmatprep.subr.mxu0 0.0
    %949 = vmatpush1.msra.mxu0 0.0
    %950 = vmatprep.subr.mxu0 0.0
    %951 = vmatpush1.msra.mxu0 0.0
    %952 = vmatprep.subr.mxu0 0.0
    %953 = vmatpush1.msra.mxu0 0.0
    %954 = vmatprep.subr.mxu0 0.0
    %955 = vmatpush1.msra.mxu0 0.0
    %956 = vmatprep.subr.mxu0 0.0
    %957 = vmatpush1.msra.mxu0 %v926
    %958 = vmatprep.subr.mxu0 0.0
    %959 = vmatpush1.msra.mxu0 %v829
    %960 = vmatprep.subr.mxu0 0.0
    %961 = vmatpush2.msra.mxu0 0.0
    %962 = vmatprep.subr.mxu0 0.0
    %963 = vmatpush2.msra.mxu0 0.0
    %964 = vmatprep.subr.mxu0 0.0
    %965 = vmatpush2.msra.mxu0 0.0
    %966 = vmatprep.subr.mxu0 0.0
    %967 = vmatpush2.msra.mxu0 0.0
    %968 = vmatprep.subr.mxu0 0.0
    %969 = vmatpush2.msra.mxu0 0.0
    %970 = vmatprep.subr.mxu0 0.0
    %971 = vmatpush2.msra.mxu0 0.0
    %972 = vmatprep.subr.mxu0 0.0
    %973 = vmatpush2.msra.mxu0 0.0
    %974 = vmatprep.subr.mxu0 0.0
    %975 = vmatpush2.msra.mxu0 0.0
    %976 = vmatprep.subr.mxu0 0.0
    %977 = vmatpush2.msra.mxu0 0.0
    %978 = vmatprep.subr.mxu0 0.0
    %979 = vmatpush2.msra.mxu0 0.0
    %980 = vmatprep.subr.mxu0 0.0
    %981 = vmatpush2.msra.mxu0 0.0
    %982 = vmatprep.subr.mxu0 0.0
    %983 = vmatpush2.msra.mxu0 0.0
    %984 = vmatprep.subr.mxu0 0.0
    %985 = vmatpush2.msra.mxu0 0.0
    %986 = vmatprep.subr.mxu0 0.0
    %987 = vmatpush2.msra.mxu0 0.0
    %988 = vmatprep.subr.mxu0 0.0
    %989 = vmatpush2.msra.mxu0 0.0
    %990 = vmatprep.subr.mxu0 0.0
    %991 = vmatpush2.msra.mxu0 0.0
    %992 = vmatprep.mubr.f32.mxu0 0.0
    %993 = vmatmul.mubr.f32.gmra.mxu0 %v924
    %v994 = vpop.f32.mrf.mxu0
    %v995 = vadd.f32 0.0, %v994
    %v996 = vpop.f32.mrf.mxu0
    %997 = vdwg.mxu0
    %v998 = vmul.f32 %v995, %v922
    %v999 = vld [vmem:[%s4] sm:$0x3]
    %v1000 = vld [vmem:[%s4 + $0x2] sm:$0x3]
    %v1001 = vld [vmem:[%s4 + $0x4] sm:$0x3]
    %v1002 = vld [vmem:[%s4 + $0x6] sm:$0x3]
    %v1003 = vld [vmem:[%s4 + $0x8] sm:$0x3]
    %v1004 = vld [vmem:[%s4 + $0xa] sm:$0x3]
    %v1005 = vld [vmem:[%s4 + $0xc] sm:$0x3]
    %v1006 = vld [vmem:[%s4 + $0xe] sm:$0x3]
    %vm1007 = vcmask 58368
    %1008 = vst.msk [vmem:[%s15] sm:$0x3] %vm1007, %v999
    %1009 = vst.msk [vmem:[%s15 + $0x2] sm:$0x3] %vm1007, %v1000
    %1010 = vst.msk [vmem:[%s15 + $0x4] sm:$0x3] %vm1007, %v1001
    %1011 = vst.msk [vmem:[%s15 + $0x6] sm:$0x3] %vm1007, %v1002
    %1012 = vst.msk [vmem:[%s15 + $0x8] sm:$0x3] %vm1007, %v1003
    %1013 = vst.msk [vmem:[%s15 + $0xa] sm:$0x3] %vm1007, %v1004
    %1014 = vst.msk [vmem:[%s15 + $0xc] sm:$0x3] %vm1007, %v1005
    %1015 = vst.msk [vmem:[%s15 + $0xe] sm:$0x3] %vm1007, %v1006
    %v1016 = vld [vmem:[%s5] sm:$0x3]
    %v1017 = vld [vmem:[%s5 + $0x2] sm:$0x3]
    %v1018 = vld [vmem:[%s5 + $0x4] sm:$0x3]
    %v1019 = vld [vmem:[%s5 + $0x6] sm:$0x3]
    %v1020 = vld [vmem:[%s5 + $0x8] sm:$0x3]
    %v1021 = vld [vmem:[%s5 + $0xa] sm:$0x3]
    %v1022 = vld [vmem:[%s5 + $0xc] sm:$0x3]
    %v1023 = vld [vmem:[%s5 + $0xe] sm:$0x3]
    %1024 = vst.msk [vmem:[%s16] sm:$0x3] %vm1007, %v1016
    %1025 = vst.msk [vmem:[%s16 + $0x2] sm:$0x3] %vm1007, %v1017
    %1026 = vst.msk [vmem:[%s16 + $0x4] sm:$0x3] %vm1007, %v1018
    %1027 = vst.msk [vmem:[%s16 + $0x6] sm:$0x3] %vm1007, %v1019
    %1028 = vst.msk [vmem:[%s16 + $0x8] sm:$0x3] %vm1007, %v1020
    %1029 = vst.msk [vmem:[%s16 + $0xa] sm:$0x3] %vm1007, %v1021
    %1030 = vst.msk [vmem:[%s16 + $0xc] sm:$0x3] %vm1007, %v1022
    %1031 = vst.msk [vmem:[%s16 + $0xe] sm:$0x3] %vm1007, %v1023
    %v1032 = vrot.slane %v693, 7
    %v1034 = vsel %vm303, %v296, %v1032
    %s1035 = scalar_lea.vmem %s15, 16
    %1036 = vst.msk [vmem:[%s1035] sm:$0x3] %vm1007, %v1034
    %1037 = vrot.lane.b32.xlu0 %v304, 80
    %v1038 = vpop.permute.xlu0 %1037
    %s1040 = scalar_lea.vmem %s16, 16
    %1041 = vst.msk [vmem:[%s1040] sm:$0x3] %vm1007, %v1038
    %v1043 = vrot.slane %v621, 1
    %1044 = vrot.lane.b32.xlu0 %v1043, 8
    %v1045 = vpop.permute.xlu0 %1044
    %1048 = vrot.lane.b32.xlu0 %v998, 16
    %v1049 = vpop.permute.xlu0 %1048
    %v1051 = vrot.slane %v998, 1
    %1052 = vrot.lane.b32.xlu0 %v1051, 24
    %v1053 = vpop.permute.xlu0 %1052
    %v1055 = vsel %vm226, %v621, %v1045
    %vm1056 = vcmask 130048
    %v1057 = vsel %vm1056, %v1055, %v1049
    %vm1058 = vcmask 195584
    %v1059 = vsel %vm1058, %v1057, %v1053
    %v1060 = vld [vmem:[#allocation9] sm:$0xff]
    %v1061 = vld [vmem:[#allocation9 + $0x8] sm:$0xff]
    %v1062 = vld [vmem:[#allocation9 + $0x10] sm:$0xff]
    %v1063 = vld [vmem:[#allocation9 + $0x18] sm:$0xff]
    %v1064 = vld [vmem:[#allocation11] sm:$0x1]
    %v1066 = vsel %vm144, %v1059, 0
    %1068 = vmatprep.subr.mxu0 0.0
    %1069 = vmatpush1.msra.mxu0 0.0
    %1070 = vmatprep.subr.mxu0 0.0
    %1071 = vmatpush1.msra.mxu0 0.0
    %1072 = vmatprep.subr.mxu0 0.0
    %1073 = vmatpush1.msra.mxu0 0.0
    %1074 = vmatprep.subr.mxu0 0.0
    %1075 = vmatpush1.msra.mxu0 0.0
    %1076 = vmatprep.subr.mxu0 0.0
    %1077 = vmatpush1.msra.mxu0 0.0
    %1078 = vmatprep.subr.mxu0 0.0
    %1079 = vmatpush1.msra.mxu0 0.0
    %1080 = vmatprep.subr.mxu0 0.0
    %1081 = vmatpush1.msra.mxu0 0.0
    %1082 = vmatprep.subr.mxu0 0.0
    %1083 = vmatpush1.msra.mxu0 0.0
    %1084 = vmatprep.subr.mxu0 0.0
    %1085 = vmatpush1.msra.mxu0 0.0
    %1086 = vmatprep.subr.mxu0 0.0
    %1087 = vmatpush1.msra.mxu0 0.0
    %1088 = vmatprep.subr.mxu0 0.0
    %1089 = vmatpush1.msra.mxu0 0.0
    %1090 = vmatprep.subr.mxu0 0.0
    %1091 = vmatpush1.msra.mxu0 0.0
    %1092 = vmatprep.subr.mxu0 0.0
    %1093 = vmatpush1.msra.mxu0 %v1063
    %1094 = vmatprep.subr.mxu0 0.0
    %1095 = vmatpush1.msra.mxu0 %v1062
    %1096 = vmatprep.subr.mxu0 0.0
    %1097 = vmatpush1.msra.mxu0 %v1061
    %1098 = vmatprep.subr.mxu0 0.0
    %1099 = vmatpush1.msra.mxu0 %v1060
    %1100 = vmatprep.subr.mxu0 0.0
    %1101 = vmatpush2.msra.mxu0 0.0
    %1102 = vmatprep.subr.mxu0 0.0
    %1103 = vmatpush2.msra.mxu0 0.0
    %1104 = vmatprep.subr.mxu0 0.0
    %1105 = vmatpush2.msra.mxu0 0.0
    %1106 = vmatprep.subr.mxu0 0.0
    %1107 = vmatpush2.msra.mxu0 0.0
    %1108 = vmatprep.subr.mxu0 0.0
    %1109 = vmatpush2.msra.mxu0 0.0
    %1110 = vmatprep.subr.mxu0 0.0
    %1111 = vmatpush2.msra.mxu0 0.0
    %1112 = vmatprep.subr.mxu0 0.0
    %1113 = vmatpush2.msra.mxu0 0.0
    %1114 = vmatprep.subr.mxu0 0.0
    %1115 = vmatpush2.msra.mxu0 0.0
    %1116 = vmatprep.subr.mxu0 0.0
    %1117 = vmatpush2.msra.mxu0 0.0
    %1118 = vmatprep.subr.mxu0 0.0
    %1119 = vmatpush2.msra.mxu0 0.0
    %1120 = vmatprep.subr.mxu0 0.0
    %1121 = vmatpush2.msra.mxu0 0.0
    %1122 = vmatprep.subr.mxu0 0.0
    %1123 = vmatpush2.msra.mxu0 0.0
    %1124 = vmatprep.subr.mxu0 0.0
    %1125 = vmatpush2.msra.mxu0 0.0
    %1126 = vmatprep.subr.mxu0 0.0
    %1127 = vmatpush2.msra.mxu0 0.0
    %1128 = vmatprep.subr.mxu0 0.0
    %1129 = vmatpush2.msra.mxu0 0.0
    %1130 = vmatprep.subr.mxu0 0.0
    %1131 = vmatpush2.msra.mxu0 0.0
    %1132 = vmatprep.mubr.f32.mxu0 0.0
    %1133 = vmatmul.mubr.f32.gmra.mxu0 %v1066
    %v1134 = vpop.f32.mrf.mxu0
    %v1135 = vadd.f32 %v1064, %v1134
    %v1136 = vpop.f32.mrf.mxu0
    %1137 = vdwg.mxu0
    %v1138 = vadd.f32 %v126, %v1135
    %v1139 = vmul.f32 %v1138, %v1138
    %v1140 = vsel %vm128, %v1139, 0.0
    %1141 = vadd.xlane.f32.xlu0 %v1140
    %v1142 = vpop.xlane.xlu0 %1141
    %v1143 = vmul.f32 %v1142, %v132
    %v1144 = vadd.f32 %v1143, 1e-06
    %v1145 = vrsqrt.pop %v1144
    %v1146 = vmul.f32 %v1138, %v1145
    %v1147 = vld [vmem:[#allocation6] sm:$0x1]
    %v1148 = vmul.f32 %v1146, %v1147
    %v1149 = vld [vmem:[#allocation12] sm:$0xff]
    %v1150 = vld [vmem:[#allocation12 + $0x8] sm:$0xff]
    %v1151 = vld [vmem:[#allocation12 + $0x10] sm:$0xff]
    %v1152 = vld [vmem:[#allocation12 + $0x18] sm:$0xff]
    %v1154 = vsel %vm144, %v1148, 0
    %1156 = vmatprep.subr.mxu0 0.0
    %1157 = vmatpush1.msra.mxu0 0.0
    %1158 = vmatprep.subr.mxu0 0.0
    %1159 = vmatpush1.msra.mxu0 0.0
    %1160 = vmatprep.subr.mxu0 0.0
    %1161 = vmatpush1.msra.mxu0 0.0
    %1162 = vmatprep.subr.mxu0 0.0
    %1163 = vmatpush1.msra.mxu0 0.0
    %1164 = vmatprep.subr.mxu0 0.0
    %1165 = vmatpush1.msra.mxu0 0.0
    %1166 = vmatprep.subr.mxu0 0.0
    %1167 = vmatpush1.msra.mxu0 0.0
    %1168 = vmatprep.subr.mxu0 0.0
    %1169 = vmatpush1.msra.mxu0 0.0
    %1170 = vmatprep.subr.mxu0 0.0
    %1171 = vmatpush1.msra.mxu0 0.0
    %1172 = vmatprep.subr.mxu0 0.0
    %1173 = vmatpush1.msra.mxu0 0.0
    %1174 = vmatprep.subr.mxu0 0.0
    %1175 = vmatpush1.msra.mxu0 0.0
    %1176 = vmatprep.subr.mxu0 0.0
    %1177 = vmatpush1.msra.mxu0 0.0
    %1178 = vmatprep.subr.mxu0 0.0
    %1179 = vmatpush1.msra.mxu0 0.0
    %1180 = vmatprep.subr.mxu0 0.0
    %1181 = vmatpush1.msra.mxu0 %v1152
    %1182 = vmatprep.subr.mxu0 0.0
    %1183 = vmatpush1.msra.mxu0 %v1151
    %1184 = vmatprep.subr.mxu0 0.0
    %1185 = vmatpush1.msra.mxu0 %v1150
    %1186 = vmatprep.subr.mxu0 0.0
    %1187 = vmatpush1.msra.mxu0 %v1149
    %1188 = vmatprep.subr.mxu0 0.0
    %1189 = vmatpush2.msra.mxu0 0.0
    %1190 = vmatprep.subr.mxu0 0.0
    %1191 = vmatpush2.msra.mxu0 0.0
    %1192 = vmatprep.subr.mxu0 0.0
    %1193 = vmatpush2.msra.mxu0 0.0
    %1194 = vmatprep.subr.mxu0 0.0
    %1195 = vmatpush2.msra.mxu0 0.0
    %1196 = vmatprep.subr.mxu0 0.0
    %1197 = vmatpush2.msra.mxu0 0.0
    %1198 = vmatprep.subr.mxu0 0.0
    %1199 = vmatpush2.msra.mxu0 0.0
    %1200 = vmatprep.subr.mxu0 0.0
    %1201 = vmatpush2.msra.mxu0 0.0
    %1202 = vmatprep.subr.mxu0 0.0
    %1203 = vmatpush2.msra.mxu0 0.0
    %1204 = vmatprep.subr.mxu0 0.0
    %1205 = vmatpush2.msra.mxu0 0.0
    %1206 = vmatprep.subr.mxu0 0.0
    %1207 = vmatpush2.msra.mxu0 0.0
    %1208 = vmatprep.subr.mxu0 0.0
    %1209 = vmatpush2.msra.mxu0 0.0
    %1210 = vmatprep.subr.mxu0 0.0
    %1211 = vmatpush2.msra.mxu0 0.0
    %1212 = vmatprep.subr.mxu0 0.0
    %1213 = vmatpush2.msra.mxu0 0.0
    %1214 = vmatprep.subr.mxu0 0.0
    %1215 = vmatpush2.msra.mxu0 0.0
    %1216 = vmatprep.subr.mxu0 0.0
    %1217 = vmatpush2.msra.mxu0 0.0
    %1218 = vmatprep.subr.mxu0 0.0
    %1219 = vmatpush2.msra.mxu0 0.0
    %1220 = vmatprep.mubr.f32.mxu0 0.0
    %1221 = vmatmul.mubr.f32.gmra.mxu0 %v1154
    %v1222 = vpop.f32.mrf.mxu0
    %v1223 = vadd.f32 0.0, %v1222
    %v1224 = vpop.f32.mrf.mxu0
    %1225 = vdwg.mxu0
    %v1226 = vxor.u32 %v1223, 2147483648
    %v1227 = vmul.f32 %v1226, 1.442695
    %v1228 = vpow.pop %v1227
    %v1229 = vadd.f32 %v1228, 1.0
    %v1230 = vrcp.pop %v1229
    %v1231 = vmul.f32 1.0, %v1230
    %v1232 = vmul.f32 %v1223, %v1231
    %1234 = vrot.lane.b32.xlu0 %v1223, 64
    %v1235 = vpop.permute.xlu0 %1234
    %v1237 = vmul.f32 %v1232, %v1235
    %v1238 = vld [vmem:[%s13] sm:$0xff]
    %v1239 = vld [vmem:[%s13 + $0x8] sm:$0xff]
    %v1240 = vld [vmem:[%s13 + $0x10] sm:$0xff]
    %v1241 = vld [vmem:[%s13 + $0x18] sm:$0xff]
    %v1242 = vld [vmem:[%s13 + $0x20] sm:$0xff]
    %v1243 = vld [vmem:[%s13 + $0x28] sm:$0xff]
    %v1244 = vld [vmem:[%s13 + $0x30] sm:$0xff]
    %v1245 = vld [vmem:[%s13 + $0x38] sm:$0xff]
    %vm1246 = vcmask 523264
    %v1248 = vsel %vm1246, %v1237, 0
    %1250 = vmatprep.subr.mxu0 0.0
    %1251 = vmatpush1.msra.mxu0 0.0
    %1252 = vmatprep.subr.mxu0 0.0
    %1253 = vmatpush1.msra.mxu0 0.0
    %1254 = vmatprep.subr.mxu0 0.0
    %1255 = vmatpush1.msra.mxu0 0.0
    %1256 = vmatprep.subr.mxu0 0.0
    %1257 = vmatpush1.msra.mxu0 0.0
    %1258 = vmatprep.subr.mxu0 0.0
    %1259 = vmatpush1.msra.mxu0 0.0
    %1260 = vmatprep.subr.mxu0 0.0
    %1261 = vmatpush1.msra.mxu0 0.0
    %1262 = vmatprep.subr.mxu0 0.0
    %1263 = vmatpush1.msra.mxu0 0.0
    %1264 = vmatprep.subr.mxu0 0.0
    %1265 = vmatpush1.msra.mxu0 0.0
    %1266 = vmatprep.subr.mxu0 0.0
    %1267 = vmatpush1.msra.mxu0 %v1245
    %1268 = vmatprep.subr.mxu0 0.0
    %1269 = vmatpush1.msra.mxu0 %v1244
    %1270 = vmatprep.subr.mxu0 0.0
    %1271 = vmatpush1.msra.mxu0 %v1243
    %1272 = vmatprep.subr.mxu0 0.0
    %1273 = vmatpush1.msra.mxu0 %v1242
    %1274 = vmatprep.subr.mxu0 0.0
    %1275 = vmatpush1.msra.mxu0 %v1241
    %1276 = vmatprep.subr.mxu0 0.0
    %1277 = vmatpush1.msra.mxu0 %v1240
    %1278 = vmatprep.subr.mxu0 0.0
    %1279 = vmatpush1.msra.mxu0 %v1239
    %1280 = vmatprep.subr.mxu0 0.0
    %1281 = vmatpush1.msra.mxu0 %v1238
    %1282 = vmatprep.subr.mxu0 0.0
    %1283 = vmatpush2.msra.mxu0 0.0
    %1284 = vmatprep.subr.mxu0 0.0
    %1285 = vmatpush2.msra.mxu0 0.0
    %1286 = vmatprep.subr.mxu0 0.0
    %1287 = vmatpush2.msra.mxu0 0.0
    %1288 = vmatprep.subr.mxu0 0.0
    %1289 = vmatpush2.msra.mxu0 0.0
    %1290 = vmatprep.subr.mxu0 0.0
    %1291 = vmatpush2.msra.mxu0 0.0
    %1292 = vmatprep.subr.mxu0 0.0
    %1293 = vmatpush2.msra.mxu0 0.0
    %1294 = vmatprep.subr.mxu0 0.0
    %1295 = vmatpush2.msra.mxu0 0.0
    %1296 = vmatprep.subr.mxu0 0.0
    %1297 = vmatpush2.msra.mxu0 0.0
    %1298 = vmatprep.subr.mxu0 0.0
    %1299 = vmatpush2.msra.mxu0 0.0
    %1300 = vmatprep.subr.mxu0 0.0
    %1301 = vmatpush2.msra.mxu0 0.0
    %1302 = vmatprep.subr.mxu0 0.0
    %1303 = vmatpush2.msra.mxu0 0.0
    %1304 = vmatprep.subr.mxu0 0.0
    %1305 = vmatpush2.msra.mxu0 0.0
    %1306 = vmatprep.subr.mxu0 0.0
    %1307 = vmatpush2.msra.mxu0 0.0
    %1308 = vmatprep.subr.mxu0 0.0
    %1309 = vmatpush2.msra.mxu0 0.0
    %1310 = vmatprep.subr.mxu0 0.0
    %1311 = vmatpush2.msra.mxu0 0.0
    %1312 = vmatprep.subr.mxu0 0.0
    %1313 = vmatpush2.msra.mxu0 0.0
    %1314 = vmatprep.mubr.f32.mxu0 0.0
    %1315 = vmatmul.mubr.f32.gmra.mxu0 %v1248
    %v1316 = vpop.f32.mrf.mxu0
    %v1317 = vadd.f32 0.0, %v1316
    %v1318 = vpop.f32.mrf.mxu0
    %1319 = vdwg.mxu0
    %v1320 = vadd.f32 %v1138, %v1317
    %1321 = vst.msk [vmem:[#allocation14] sm:$0x1] %vm128, %v1320
    // Predicated region
    $region82: #{block_cache_forward.1} parent=1 // pred_check
      _
    $region83: #{block_cache_forward.1} parent=1 // pred_check_branch
      %1323 = sbr.rel (0) target = $region85
    $region84: #{block_cache_forward.1} parent=1 // pred_region
      %s1325 = ssub.s32 16, 16
      %1326 = vsyncadd [#allocation5], %s1325
      %s1328 = sshll.u32 [#allocation14], 4
      %s1329 = int_to_ptr.vmem [resolvable:$true] %s1328
      %1331 = dma.vmem_to_hbm [thread:$0]  %s1329, 16, %s14, [#allocation5]
    $region85: #{block_cache_forward.1} parent=1 // pred_fallthru
      _
    // Predicated region
    $region86: #{block_cache_forward.1} parent=1 // pred_check
      _
    $region87: #{block_cache_forward.1} parent=1 // pred_check_branch
      %1333 = sbr.rel (0) target = $region89
    $region88: #{block_cache_forward.1} parent=1 // pred_region
      _
    $region89: #{block_cache_forward.1} parent=1 // pred_fallthru
      _
    // Predicated region
    $region90: #{block_cache_forward.1} parent=1 // pred_check
      _
    $region91: #{block_cache_forward.1} parent=1 // pred_check_branch
      %1335 = sbr.rel (0) target = $region93
    $region92: #{block_cache_forward.1} parent=1 // pred_region
      _
    $region93: #{block_cache_forward.1} parent=1 // pred_fallthru
      _
    // Predicated region
    $region94: #{block_cache_forward.1} parent=1 // pred_check
      _
    $region95: #{block_cache_forward.1} parent=1 // pred_check_branch
      %1337 = sbr.rel (0) target = $region97
    $region96: #{block_cache_forward.1} parent=1 // pred_region
      %1338 = dma.done [#allocation5], 16
    $region97: #{block_cache_forward.1} parent=1 // pred_fallthru
      _
    // Predicated region
    $region98: #{block_cache_forward.1} parent=1 // pred_check
      _
    $region99: #{block_cache_forward.1} parent=1 // pred_check_branch
      %1340 = sbr.rel (0) target = $region101
    $region100: #{block_cache_forward.1} parent=1 // pred_region
      _
    $region101: #{block_cache_forward.1} parent=1 // pred_fallthru
      _
    // Predicated region
    $region102: #{block_cache_forward.1} parent=1 // pred_check
      _
    $region103: #{block_cache_forward.1} parent=1 // pred_check_branch
      %1342 = sbr.rel (0) target = $region105
    $region104: #{block_cache_forward.1} parent=1 // pred_region
      _
    $region105: #{block_cache_forward.1} parent=1 // pred_fallthru
      _
    %1343 = vsyncpa [#allocation4], 1
    %1344 = vsyncpa [#allocation7], 1
    %1345 = vsyncpa [#allocation10], 1
    %1346 = vsyncpa [#allocation13], 1
    %1347 = vsyncpa [#allocation5], 1

</llo_original>
